<compile_context>
chip_gen: v7x
topology: tpu7x:2x2x1
jax: 0.10.0
libtpu: 0.0.40
codegen_flags: <defaults>
</compile_context>

<pallas_src>
import functools

import jax
import jax.numpy as jnp
from jax.experimental import pallas as pl
from jax.experimental.pallas import tpu as pltpu


def _dense_corr_full_kernel(text_ref, wc_ref, w2_ref, b_ref, mask_ref, out_ref,
                            x1t_ref, g_ref, *, Ht, Wt, KH, KW, Wpe):
    # layout: text_ref VMEM (1, Cm, Le)        bf16  extended tomatch, flat rows of width Wpe
    # layout: wc_ref   VMEM (1, C, Ht*Wt*Cm)   bf16  per-batch stage-1 weight,
    #                   wc[cm*Ct+ct, k*Cm+cm'] = template[b, ct, k] * (cm == cm')
    # layout: w2_ref   VMEM (KH*KW, O, C)      bf16  merge-conv weight per tap
    # layout: b_ref    VMEM (O, 1)             f32
    # layout: mask_ref VMEM (1, N1)            f32   1 inside the merge-conv zero-pad interior
    # layout: out_ref  VMEM (1, O, Hm*Wpe)     f32   flat output slab (already channel-first)
    # layout: x1t_ref  VMEM (Ht*Wt*Cm, N1)     bf16  stage-1 im2col (lane-shifted rows)
    # layout: g_ref    VMEM (C, N1)            bf16  masked corr in the flat layout
    Cm = text_ref.shape[1]
    O, N2 = out_ref.shape[1], out_ref.shape[2]
    N1 = g_ref.shape[1]

    # ---- stage-1 im2col: each tap is a contiguous lane-shifted slice of the flat
    #      extended tomatch; destination rows k*Cm..k*Cm+Cm-1 are lane-dense (N1 wide).
    for dy in range(Ht):
        for dx in range(Wt):
            k = dy * Wt + dx
            d1 = dy * Wpe + dx
            x1t_ref[k * Cm:(k + 1) * Cm, :] = text_ref[0, :, d1:d1 + N1]

    # ---- stage 1: one MXU matmul, then zero-mask the positions that correspond to the
    #      merge conv's zero padding (replication-padded garbage must not leak into it).
    g = jnp.dot(wc_ref[0], x1t_ref[...], preferred_element_type=jnp.float32)  # [C, N1]
    g_ref[...] = (g * mask_ref[...]).astype(g_ref.dtype)   # single dense bf16 store

    # ---- stage 2: KH*KW accumulating matmuls on lane-shifted windows of g (no second
    #      im2col scratch); bias folded into the accumulator init.
    acc = jnp.broadcast_to(b_ref[...], (O, N2))                               # [O, N2] f32
    for ky in range(KH):
        for kx in range(KW):
            tap = ky * KW + kx
            d2 = ky * Wpe + kx
            acc = acc + jnp.dot(w2_ref[tap], g_ref[:, d2:d2 + N2],
                                preferred_element_type=jnp.float32)

    # ---- single full-block lane-dense output write (N2 = Hm*Wpe lanes)
    out_ref[0] = acc


@functools.partial(jax.jit, static_argnames=("kernel_size", "compute_dtype"))
def dense_corr2d_full(template, tomatch, weight, bias, *, kernel_size=(3, 3),
                      compute_dtype=jnp.bfloat16):
    """Forward of DenseCorr2d_full. Inputs/outputs are NCHW like the PyTorch module."""
    B, Ct, Ht, Wt = template.shape
    _, Cm, Hm, Wm = tomatch.shape
    KH, KW = kernel_size
    O = weight.shape[0]
    C = Ct * Cm
    K = Ht * Wt

    PH, PW = (KH - 1) // 2, (KW - 1) // 2          # 'same' padding, smaller part top/left
    Wpe = Wm + (Wt - 1) + (KW - 1)                 # common flat row width
    Hpe = Hm + (Ht - 1) + (KH - 1)
    Hp = Hm + KH - 1
    N1 = Hp * Wpe + (KW - 1)                       # stage-1 / corr flat extent
    N2 = Hm * Wpe                                  # stage-2 output flat extent
    Le = N1 + (Ht - 1) * Wpe + (Wt - 1)            # extended tomatch flat extent

    # glue: extended tomatch = replication pad (top PH / left PW are don't-care but kept
    # finite; bottom/right cover both the dense-corr taps and the merge-conv reach),
    # flattened row-major with width Wpe, tail edge-padded so all tap slices are in range.
    text = jnp.pad(tomatch.astype(compute_dtype),
                   ((0, 0), (0, 0),
                    (PH, (Ht - 1) + (KH - 1 - PH)),
                    (PW, (Wt - 1) + (KW - 1 - PW))), mode="edge")             # [B,Cm,Hpe,Wpe]
    text = text.reshape(B, Cm, Hpe * Wpe)
    text = jnp.pad(text, ((0, 0), (0, 0), (0, Le - Hpe * Wpe)), mode="edge")  # [B,Cm,Le]

    # glue: interior mask of the merge conv's zero padding in the flat layout
    q = jnp.arange(N1)
    qi, qj = q // Wpe, q % Wpe
    mask = (((qi >= PH) & (qi < PH + Hm)) & ((qj >= PW) & (qj < PW + Wm)))
    mask = mask.astype(jnp.float32).reshape(1, N1)

    # glue: per-batch block-structured stage-1 weight [C, K*Cm]
    #   wc[b, cm*Ct+ct, k*Cm+cm'] = template[b, ct, k] * (cm == cm')
    tpl_k = template.reshape(B, Ct, K).astype(jnp.float32)
    wc = jnp.einsum("btk,ij->bitkj", tpl_k, jnp.eye(Cm, dtype=jnp.float32))
    wc = wc.reshape(B, Cm * Ct, K * Cm).astype(compute_dtype)

    # glue: merge-conv weight per tap [KH*KW, O, C] (channel order c = cm*Ct+ct kept)
    w2 = jnp.transpose(weight.astype(jnp.float32), (2, 3, 0, 1)).reshape(KH * KW, O, C)
    w2 = w2.astype(compute_dtype)
    b2 = bias.reshape(O, 1).astype(jnp.float32)

    kernel = functools.partial(_dense_corr_full_kernel, Ht=Ht, Wt=Wt, KH=KH, KW=KW,
                               Wpe=Wpe)

    out_slab = pl.pallas_call(
        kernel,
        out_shape=jax.ShapeDtypeStruct((B, O, N2), jnp.float32),
        grid=(B,),
        in_specs=[
            pl.BlockSpec((1, Cm, Le), lambda b: (b, 0, 0)),        # extended tomatch (flat)
            pl.BlockSpec((1, C, K * Cm), lambda b: (b, 0, 0)),     # per-batch corr weight
            pl.BlockSpec((KH * KW, O, C), lambda b: (0, 0, 0)),    # merge-conv weight (taps)
            pl.BlockSpec((O, 1), lambda b: (0, 0)),                # bias
            pl.BlockSpec((1, N1), lambda b: (0, 0)),               # interior mask
        ],
        out_specs=pl.BlockSpec((1, O, N2), lambda b: (b, 0, 0)),
        scratch_shapes=[
            pltpu.VMEM((K * Cm, N1), compute_dtype),               # stage-1 im2col (bf16)
            pltpu.VMEM((C, N1), compute_dtype),                    # masked corr (bf16)
        ],
        compiler_params=pltpu.CompilerParams(
            dimension_semantics=("parallel",),
            vmem_limit_bytes=32 * 1024 * 1024),
    )(text, wc, w2, b2, mask)

    # glue: crop the garbage columns; already NCHW — no transpose needed.
    return out_slab.reshape(B, O, Hm, Wpe)[:, :, :, :Wm]


def ref_forward(template, tomatch, weight, bias, *, kernel_size=(3, 3)):
    """Pure-JAX f32 reference matching the PyTorch module semantics (NCHW)."""
    B, Ct, Ht, Wt = template.shape
    _, Cm, Hm, Wm = tomatch.shape
    KH, KW = kernel_size
    O = weight.shape[0]
    tp = jnp.pad(tomatch, ((0, 0), (0, 0), (0, Ht - 1), (0, Wt - 1)), mode="edge")
    corr = jnp.zeros((B, Cm, Ct, Hm, Wm), jnp.float32)
    for dy in range(Ht):
        for dx in range(Wt):
            corr = corr + (tp[:, :, None, dy:dy + Hm, dx:dx + Wm]
                           * template[:, None, :, dy, dx][:, :, :, None, None])
    corr = corr.reshape(B, Cm * Ct, Hm, Wm)                    # channel = cm*Ct + ct
    cp = jnp.pad(corr, ((0, 0), (0, 0), ((KH - 1) // 2, KH - 1 - (KH - 1) // 2),
                        ((KW - 1) // 2, KW - 1 - (KW - 1) // 2)))
    out = jnp.zeros((B, O, Hm, Wm), jnp.float32)
    for ky in range(KH):
        for kx in range(KW):
            out = out + jnp.einsum("bchw,oc->bohw",
                                   cp[:, :, ky:ky + Hm, kx:kx + Wm],
                                   weight[:, :, ky, kx],
                                   precision=jax.lax.Precision.HIGHEST)
    return out + bias[None, :, None, None]


if __name__ == "__main__":
    key = jax.random.PRNGKey(0)
    k1, k2, k3, k4 = jax.random.split(key, 4)

    B, Ct, Ht, Wt = 2, 4, 3, 3          # template: [B, Ct, Ht, Wt]
    Cm, Hm, Wm = 4, 16, 16              # tomatch:  [B, Cm, Hm, Wm]
    O = 8                               # out_channels
    KH, KW = 3, 3                       # merge-conv kernel_size (module default)

    template = jax.random.normal(k1, (B, Ct, Ht, Wt), jnp.float32)
    tomatch = jax.random.normal(k2, (B, Cm, Hm, Wm), jnp.float32)

    # deterministic Conv2d(Cm*Ct, O, 3x3, bias=True) parameters (PyTorch fan-in bound)
    fan_in = Cm * Ct * KH * KW
    bound = 1.0 / (fan_in ** 0.5)
    weight = jax.random.uniform(k3, (O, Cm * Ct, KH, KW), jnp.float32, -bound, bound)
    bias = jax.random.uniform(k4, (O,), jnp.float32, -bound, bound)

    out = dense_corr2d_full(template, tomatch, weight, bias, kernel_size=(KH, KW))
    out = jax.block_until_ready(out)

    ref = ref_forward(template, tomatch, weight, bias, kernel_size=(KH, KW))
    assert out.shape == (B, O, Hm, Wm), out.shape
    # bf16 MXU operands (f32 accumulation) => expect ~1% of the output scale worst case.
    err = float(jnp.max(jnp.abs(out - ref)))
    scale = float(jnp.max(jnp.abs(ref)))
    tol = 2e-2 * scale + 1e-2
    if err > tol:
        raise AssertionError(f"kernel/reference mismatch: max abs err {err:.4g} > tol {tol:.4g}")
    print("KERNEL_OK")
</pallas_src>

<mosaic_0001>
module attributes {stable_mosaic.version = 11 : i64} {
  func.func @_dense_corr_full_kernel(%arg0: i32, %arg1: memref<1x4x404xbf16, #tpu.memory_space<vmem>>, %arg2: memref<1x16x36xbf16, #tpu.memory_space<vmem>>, %arg3: memref<9x8x16xbf16, #tpu.memory_space<vmem>>, %arg4: memref<8x1xf32, #tpu.memory_space<vmem>>, %arg5: memref<1x362xf32, #tpu.memory_space<vmem>>, %arg6: memref<1x8x320xf32, #tpu.memory_space<vmem>>, %arg7: memref<36x362xbf16, #tpu.memory_space<vmem>>, %arg8: memref<16x362xbf16, #tpu.memory_space<vmem>>) attributes {dimension_semantics = [#tpu.dimension_semantics<parallel>], iteration_bounds = array<i64: 2>, scalar_prefetch = 0 : i64, scratch_operands = 2 : i64, tpu.core_type = #tpu.core_type<tc>, window_params = [{transform_indices = @transform_0, window_bounds = array<i64: 1, 4, 404>}, {transform_indices = @transform_1, window_bounds = array<i64: 1, 16, 36>}, {pipeline_mode = #tpu.pipeline_mode<synchronous>, transform_indices = @transform_2, window_bounds = array<i64: 9, 8, 16>}, {pipeline_mode = #tpu.pipeline_mode<synchronous>, transform_indices = @transform_3, window_bounds = array<i64: 8, 1>}, {pipeline_mode = #tpu.pipeline_mode<synchronous>, transform_indices = @transform_4, window_bounds = array<i64: 1, 362>}, {transform_indices = @transform_5, window_bounds = array<i64: 1, 8, 320>}]} {
    %c0 = arith.constant 0 : index
    %c0_0 = arith.constant 0 : index
    %c0_1 = arith.constant 0 : index
    %0 = vector.load %arg1[%c0, %c0_0, %c0_1] : memref<1x4x404xbf16, #tpu.memory_space<vmem>>, vector<1x4x362xbf16>
    %1 = vector.shape_cast %0 : vector<1x4x362xbf16> to vector<4x362xbf16>
    %c0_2 = arith.constant 0 : index
    %c0_3 = arith.constant 0 : index
    %2 = vector.load %arg7[%c0_2, %c0_3] : memref<36x362xbf16, #tpu.memory_space<vmem>>, vector<4x362xbf16>
    tpu.vector_store %arg7[%c0_2, %c0_3], %1 {strides = array<i32>} : memref<36x362xbf16, #tpu.memory_space<vmem>>, vector<4x362xbf16>,
    %c0_4 = arith.constant 0 : index
    %c0_5 = arith.constant 0 : index
    %c1 = arith.constant 1 : index
    %3 = vector.load %arg1[%c0_4, %c0_5, %c1] : memref<1x4x404xbf16, #tpu.memory_space<vmem>>, vector<1x4x362xbf16>
    %4 = vector.shape_cast %3 : vector<1x4x362xbf16> to vector<4x362xbf16>
    %c4 = arith.constant 4 : index
    %c0_6 = arith.constant 0 : index
    %5 = vector.load %arg7[%c4, %c0_6] : memref<36x362xbf16, #tpu.memory_space<vmem>>, vector<4x362xbf16>
    tpu.vector_store %arg7[%c4, %c0_6], %4 {strides = array<i32>} : memref<36x362xbf16, #tpu.memory_space<vmem>>, vector<4x362xbf16>,
    %c0_7 = arith.constant 0 : index
    %c0_8 = arith.constant 0 : index
    %c2 = arith.constant 2 : index
    %6 = vector.load %arg1[%c0_7, %c0_8, %c2] : memref<1x4x404xbf16, #tpu.memory_space<vmem>>, vector<1x4x362xbf16>
    %7 = vector.shape_cast %6 : vector<1x4x362xbf16> to vector<4x362xbf16>
    %c8 = arith.constant 8 : index
    %c0_9 = arith.constant 0 : index
    %8 = vector.load %arg7[%c8, %c0_9] : memref<36x362xbf16, #tpu.memory_space<vmem>>, vector<4x362xbf16>
    tpu.vector_store %arg7[%c8, %c0_9], %7 {strides = array<i32>} : memref<36x362xbf16, #tpu.memory_space<vmem>>, vector<4x362xbf16>,
    %c0_10 = arith.constant 0 : index
    %c0_11 = arith.constant 0 : index
    %c20 = arith.constant 20 : index
    %9 = vector.load %arg1[%c0_10, %c0_11, %c20] : memref<1x4x404xbf16, #tpu.memory_space<vmem>>, vector<1x4x362xbf16>
    %10 = vector.shape_cast %9 : vector<1x4x362xbf16> to vector<4x362xbf16>
    %c12 = arith.constant 12 : index
    %c0_12 = arith.constant 0 : index
    %11 = vector.load %arg7[%c12, %c0_12] : memref<36x362xbf16, #tpu.memory_space<vmem>>, vector<4x362xbf16>
    tpu.vector_store %arg7[%c12, %c0_12], %10 {strides = array<i32>} : memref<36x362xbf16, #tpu.memory_space<vmem>>, vector<4x362xbf16>,
    %c0_13 = arith.constant 0 : index
    %c0_14 = arith.constant 0 : index
    %c21 = arith.constant 21 : index
    %12 = vector.load %arg1[%c0_13, %c0_14, %c21] : memref<1x4x404xbf16, #tpu.memory_space<vmem>>, vector<1x4x362xbf16>
    %13 = vector.shape_cast %12 : vector<1x4x362xbf16> to vector<4x362xbf16>
    %c16 = arith.constant 16 : index
    %c0_15 = arith.constant 0 : index
    %14 = vector.load %arg7[%c16, %c0_15] : memref<36x362xbf16, #tpu.memory_space<vmem>>, vector<4x362xbf16>
    tpu.vector_store %arg7[%c16, %c0_15], %13 {strides = array<i32>} : memref<36x362xbf16, #tpu.memory_space<vmem>>, vector<4x362xbf16>,
    %c0_16 = arith.constant 0 : index
    %c0_17 = arith.constant 0 : index
    %c22 = arith.constant 22 : index
    %15 = vector.load %arg1[%c0_16, %c0_17, %c22] : memref<1x4x404xbf16, #tpu.memory_space<vmem>>, vector<1x4x362xbf16>
    %16 = vector.shape_cast %15 : vector<1x4x362xbf16> to vector<4x362xbf16>
    %c20_18 = arith.constant 20 : index
    %c0_19 = arith.constant 0 : index
    %17 = vector.load %arg7[%c20_18, %c0_19] : memref<36x362xbf16, #tpu.memory_space<vmem>>, vector<4x362xbf16>
    tpu.vector_store %arg7[%c20_18, %c0_19], %16 {strides = array<i32>} : memref<36x362xbf16, #tpu.memory_space<vmem>>, vector<4x362xbf16>,
    %c0_20 = arith.constant 0 : index
    %c0_21 = arith.constant 0 : index
    %c40 = arith.constant 40 : index
    %18 = vector.load %arg1[%c0_20, %c0_21, %c40] : memref<1x4x404xbf16, #tpu.memory_space<vmem>>, vector<1x4x362xbf16>
    %19 = vector.shape_cast %18 : vector<1x4x362xbf16> to vector<4x362xbf16>
    %c24 = arith.constant 24 : index
    %c0_22 = arith.constant 0 : index
    %20 = vector.load %arg7[%c24, %c0_22] : memref<36x362xbf16, #tpu.memory_space<vmem>>, vector<4x362xbf16>
    tpu.vector_store %arg7[%c24, %c0_22], %19 {strides = array<i32>} : memref<36x362xbf16, #tpu.memory_space<vmem>>, vector<4x362xbf16>,
    %c0_23 = arith.constant 0 : index
    %c0_24 = arith.constant 0 : index
    %c41 = arith.constant 41 : index
    %21 = vector.load %arg1[%c0_23, %c0_24, %c41] : memref<1x4x404xbf16, #tpu.memory_space<vmem>>, vector<1x4x362xbf16>
    %22 = vector.shape_cast %21 : vector<1x4x362xbf16> to vector<4x362xbf16>
    %c28 = arith.constant 28 : index
    %c0_25 = arith.constant 0 : index
    %23 = vector.load %arg7[%c28, %c0_25] : memref<36x362xbf16, #tpu.memory_space<vmem>>, vector<4x362xbf16>
    tpu.vector_store %arg7[%c28, %c0_25], %22 {strides = array<i32>} : memref<36x362xbf16, #tpu.memory_space<vmem>>, vector<4x362xbf16>,
    %c0_26 = arith.constant 0 : index
    %c0_27 = arith.constant 0 : index
    %c42 = arith.constant 42 : index
    %24 = vector.load %arg1[%c0_26, %c0_27, %c42] : memref<1x4x404xbf16, #tpu.memory_space<vmem>>, vector<1x4x362xbf16>
    %25 = vector.shape_cast %24 : vector<1x4x362xbf16> to vector<4x362xbf16>
    %c32 = arith.constant 32 : index
    %c0_28 = arith.constant 0 : index
    %26 = vector.load %arg7[%c32, %c0_28] : memref<36x362xbf16, #tpu.memory_space<vmem>>, vector<4x362xbf16>
    tpu.vector_store %arg7[%c32, %c0_28], %25 {strides = array<i32>} : memref<36x362xbf16, #tpu.memory_space<vmem>>, vector<4x362xbf16>,
    %c0_29 = arith.constant 0 : index
    %c0_30 = arith.constant 0 : index
    %c0_31 = arith.constant 0 : index
    %27 = vector.load %arg2[%c0_29, %c0_30, %c0_31] : memref<1x16x36xbf16, #tpu.memory_space<vmem>>, vector<1x16x36xbf16>
    %28 = vector.shape_cast %27 : vector<1x16x36xbf16> to vector<16x36xbf16>
    %c0_32 = arith.constant 0 : index
    %c0_33 = arith.constant 0 : index
    %29 = vector.load %arg7[%c0_32, %c0_33] : memref<36x362xbf16, #tpu.memory_space<vmem>>, vector<36x362xbf16>
    %cst = arith.constant dense<0.000000e+00> : vector<16x362xf32>
    %30 = tpu.matmul %28, %29, %cst {dimension_numbers = #tpu.dot_dimension_numbers<[1], [0], [0], [1], [0, 0, 1, 1], [], []>} : vector<16x36xbf16>, vector<36x362xbf16>, vector<16x362xf32> -> vector<16x362xf32>
    %c0_34 = arith.constant 0 : index
    %c0_35 = arith.constant 0 : index
    %31 = vector.load %arg5[%c0_34, %c0_35] : memref<1x362xf32, #tpu.memory_space<vmem>>, vector<1x362xf32>
    %32 = vector.broadcast %31 : vector<1x362xf32> to vector<16x362xf32>
    %33 = arith.mulf %30, %32 : vector<16x362xf32>
    %34 = arith.truncf %33 : vector<16x362xf32> to vector<16x362xbf16>
    %c0_36 = arith.constant 0 : index
    %c0_37 = arith.constant 0 : index
    %35 = vector.load %arg8[%c0_36, %c0_37] : memref<16x362xbf16, #tpu.memory_space<vmem>>, vector<16x362xbf16>
    tpu.vector_store %arg8[%c0_36, %c0_37], %34 {strides = array<i32>} : memref<16x362xbf16, #tpu.memory_space<vmem>>, vector<16x362xbf16>,
    %c0_38 = arith.constant 0 : index
    %c0_39 = arith.constant 0 : index
    %36 = vector.load %arg4[%c0_38, %c0_39] : memref<8x1xf32, #tpu.memory_space<vmem>>, vector<8x1xf32>
    %37 = vector.shape_cast %36 : vector<8x1xf32> to vector<8x1xf32>
    %38 = vector.broadcast %37 : vector<8x1xf32> to vector<8x320xf32>
    %c0_40 = arith.constant 0 : index
    %c0_41 = arith.constant 0 : index
    %c0_42 = arith.constant 0 : index
    %39 = vector.load %arg3[%c0_40, %c0_41, %c0_42] : memref<9x8x16xbf16, #tpu.memory_space<vmem>>, vector<1x8x16xbf16>
    %40 = vector.shape_cast %39 : vector<1x8x16xbf16> to vector<8x16xbf16>
    %c0_43 = arith.constant 0 : index
    %c0_44 = arith.constant 0 : index
    %41 = vector.load %arg8[%c0_43, %c0_44] : memref<16x362xbf16, #tpu.memory_space<vmem>>, vector<16x320xbf16>
    %cst_45 = arith.constant dense<0.000000e+00> : vector<8x320xf32>
    %42 = tpu.matmul %40, %41, %cst_45 {dimension_numbers = #tpu.dot_dimension_numbers<[1], [0], [0], [1], [0, 0, 1, 1], [], []>} : vector<8x16xbf16>, vector<16x320xbf16>, vector<8x320xf32> -> vector<8x320xf32>
    %43 = arith.addf %38, %42 : vector<8x320xf32>
    %c1_46 = arith.constant 1 : index
    %c0_47 = arith.constant 0 : index
    %c0_48 = arith.constant 0 : index
    %44 = vector.load %arg3[%c1_46, %c0_47, %c0_48] : memref<9x8x16xbf16, #tpu.memory_space<vmem>>, vector<1x8x16xbf16>
    %45 = vector.shape_cast %44 : vector<1x8x16xbf16> to vector<8x16xbf16>
    %c0_49 = arith.constant 0 : index
    %c1_50 = arith.constant 1 : index
    %46 = vector.load %arg8[%c0_49, %c1_50] : memref<16x362xbf16, #tpu.memory_space<vmem>>, vector<16x320xbf16>
    %cst_51 = arith.constant dense<0.000000e+00> : vector<8x320xf32>
    %47 = tpu.matmul %45, %46, %cst_51 {dimension_numbers = #tpu.dot_dimension_numbers<[1], [0], [0], [1], [0, 0, 1, 1], [], []>} : vector<8x16xbf16>, vector<16x320xbf16>, vector<8x320xf32> -> vector<8x320xf32>
    %48 = arith.addf %43, %47 : vector<8x320xf32>
    %c2_52 = arith.constant 2 : index
    %c0_53 = arith.constant 0 : index
    %c0_54 = arith.constant 0 : index
    %49 = vector.load %arg3[%c2_52, %c0_53, %c0_54] : memref<9x8x16xbf16, #tpu.memory_space<vmem>>, vector<1x8x16xbf16>
    %50 = vector.shape_cast %49 : vector<1x8x16xbf16> to vector<8x16xbf16>
    %c0_55 = arith.constant 0 : index
    %c2_56 = arith.constant 2 : index
    %51 = vector.load %arg8[%c0_55, %c2_56] : memref<16x362xbf16, #tpu.memory_space<vmem>>, vector<16x320xbf16>
    %cst_57 = arith.constant dense<0.000000e+00> : vector<8x320xf32>
    %52 = tpu.matmul %50, %51, %cst_57 {dimension_numbers = #tpu.dot_dimension_numbers<[1], [0], [0], [1], [0, 0, 1, 1], [], []>} : vector<8x16xbf16>, vector<16x320xbf16>, vector<8x320xf32> -> vector<8x320xf32>
    %53 = arith.addf %48, %52 : vector<8x320xf32>
    %c3 = arith.constant 3 : index
    %c0_58 = arith.constant 0 : index
    %c0_59 = arith.constant 0 : index
    %54 = vector.load %arg3[%c3, %c0_58, %c0_59] : memref<9x8x16xbf16, #tpu.memory_space<vmem>>, vector<1x8x16xbf16>
    %55 = vector.shape_cast %54 : vector<1x8x16xbf16> to vector<8x16xbf16>
    %c0_60 = arith.constant 0 : index
    %c20_61 = arith.constant 20 : index
    %56 = vector.load %arg8[%c0_60, %c20_61] : memref<16x362xbf16, #tpu.memory_space<vmem>>, vector<16x320xbf16>
    %cst_62 = arith.constant dense<0.000000e+00> : vector<8x320xf32>
    %57 = tpu.matmul %55, %56, %cst_62 {dimension_numbers = #tpu.dot_dimension_numbers<[1], [0], [0], [1], [0, 0, 1, 1], [], []>} : vector<8x16xbf16>, vector<16x320xbf16>, vector<8x320xf32> -> vector<8x320xf32>
    %58 = arith.addf %53, %57 : vector<8x320xf32>
    %c4_63 = arith.constant 4 : index
    %c0_64 = arith.constant 0 : index
    %c0_65 = arith.constant 0 : index
    %59 = vector.load %arg3[%c4_63, %c0_64, %c0_65] : memref<9x8x16xbf16, #tpu.memory_space<vmem>>, vector<1x8x16xbf16>
    %60 = vector.shape_cast %59 : vector<1x8x16xbf16> to vector<8x16xbf16>
    %c0_66 = arith.constant 0 : index
    %c21_67 = arith.constant 21 : index
    %61 = vector.load %arg8[%c0_66, %c21_67] : memref<16x362xbf16, #tpu.memory_space<vmem>>, vector<16x320xbf16>
    %cst_68 = arith.constant dense<0.000000e+00> : vector<8x320xf32>
    %62 = tpu.matmul %60, %61, %cst_68 {dimension_numbers = #tpu.dot_dimension_numbers<[1], [0], [0], [1], [0, 0, 1, 1], [], []>} : vector<8x16xbf16>, vector<16x320xbf16>, vector<8x320xf32> -> vector<8x320xf32>
    %63 = arith.addf %58, %62 : vector<8x320xf32>
    %c5 = arith.constant 5 : index
    %c0_69 = arith.constant 0 : index
    %c0_70 = arith.constant 0 : index
    %64 = vector.load %arg3[%c5, %c0_69, %c0_70] : memref<9x8x16xbf16, #tpu.memory_space<vmem>>, vector<1x8x16xbf16>
    %65 = vector.shape_cast %64 : vector<1x8x16xbf16> to vector<8x16xbf16>
    %c0_71 = arith.constant 0 : index
    %c22_72 = arith.constant 22 : index
    %66 = vector.load %arg8[%c0_71, %c22_72] : memref<16x362xbf16, #tpu.memory_space<vmem>>, vector<16x320xbf16>
    %cst_73 = arith.constant dense<0.000000e+00> : vector<8x320xf32>
    %67 = tpu.matmul %65, %66, %cst_73 {dimension_numbers = #tpu.dot_dimension_numbers<[1], [0], [0], [1], [0, 0, 1, 1], [], []>} : vector<8x16xbf16>, vector<16x320xbf16>, vector<8x320xf32> -> vector<8x320xf32>
    %68 = arith.addf %63, %67 : vector<8x320xf32>
    %c6 = arith.constant 6 : index
    %c0_74 = arith.constant 0 : index
    %c0_75 = arith.constant 0 : index
    %69 = vector.load %arg3[%c6, %c0_74, %c0_75] : memref<9x8x16xbf16, #tpu.memory_space<vmem>>, vector<1x8x16xbf16>
    %70 = vector.shape_cast %69 : vector<1x8x16xbf16> to vector<8x16xbf16>
    %c0_76 = arith.constant 0 : index
    %c40_77 = arith.constant 40 : index
    %71 = vector.load %arg8[%c0_76, %c40_77] : memref<16x362xbf16, #tpu.memory_space<vmem>>, vector<16x320xbf16>
    %cst_78 = arith.constant dense<0.000000e+00> : vector<8x320xf32>
    %72 = tpu.matmul %70, %71, %cst_78 {dimension_numbers = #tpu.dot_dimension_numbers<[1], [0], [0], [1], [0, 0, 1, 1], [], []>} : vector<8x16xbf16>, vector<16x320xbf16>, vector<8x320xf32> -> vector<8x320xf32>
    %73 = arith.addf %68, %72 : vector<8x320xf32>
    %c7 = arith.constant 7 : index
    %c0_79 = arith.constant 0 : index
    %c0_80 = arith.constant 0 : index
    %74 = vector.load %arg3[%c7, %c0_79, %c0_80] : memref<9x8x16xbf16, #tpu.memory_space<vmem>>, vector<1x8x16xbf16>
    %75 = vector.shape_cast %74 : vector<1x8x16xbf16> to vector<8x16xbf16>
    %c0_81 = arith.constant 0 : index
    %c41_82 = arith.constant 41 : index
    %76 = vector.load %arg8[%c0_81, %c41_82] : memref<16x362xbf16, #tpu.memory_space<vmem>>, vector<16x320xbf16>
    %cst_83 = arith.constant dense<0.000000e+00> : vector<8x320xf32>
    %77 = tpu.matmul %75, %76, %cst_83 {dimension_numbers = #tpu.dot_dimension_numbers<[1], [0], [0], [1], [0, 0, 1, 1], [], []>} : vector<8x16xbf16>, vector<16x320xbf16>, vector<8x320xf32> -> vector<8x320xf32>
    %78 = arith.addf %73, %77 : vector<8x320xf32>
    %c8_84 = arith.constant 8 : index
    %c0_85 = arith.constant 0 : index
    %c0_86 = arith.constant 0 : index
    %79 = vector.load %arg3[%c8_84, %c0_85, %c0_86] : memref<9x8x16xbf16, #tpu.memory_space<vmem>>, vector<1x8x16xbf16>
    %80 = vector.shape_cast %79 : vector<1x8x16xbf16> to vector<8x16xbf16>
    %c0_87 = arith.constant 0 : index
    %c42_88 = arith.constant 42 : index
    %81 = vector.load %arg8[%c0_87, %c42_88] : memref<16x362xbf16, #tpu.memory_space<vmem>>, vector<16x320xbf16>
    %cst_89 = arith.constant dense<0.000000e+00> : vector<8x320xf32>
    %82 = tpu.matmul %80, %81, %cst_89 {dimension_numbers = #tpu.dot_dimension_numbers<[1], [0], [0], [1], [0, 0, 1, 1], [], []>} : vector<8x16xbf16>, vector<16x320xbf16>, vector<8x320xf32> -> vector<8x320xf32>
    %83 = arith.addf %78, %82 : vector<8x320xf32>
    %c0_90 = arith.constant 0 : index
    %c0_91 = arith.constant 0 : index
    %c0_92 = arith.constant 0 : index
    %84 = vector.load %arg6[%c0_90, %c0_91, %c0_92] : memref<1x8x320xf32, #tpu.memory_space<vmem>>, vector<1x8x320xf32>
    %85 = vector.shape_cast %84 : vector<1x8x320xf32> to vector<8x320xf32>
    %86 = vector.shape_cast %83 : vector<8x320xf32> to vector<1x8x320xf32>
    tpu.vector_store %arg6[%c0_90, %c0_91, %c0_92], %86 {strides = array<i32>} : memref<1x8x320xf32, #tpu.memory_space<vmem>>, vector<1x8x320xf32>,
    return
  }
  func.func @transform_0(%arg0: i32) -> (i32, i32, i32) {
    %c0_i32 = arith.constant 0 : i32
    %c0_i32_0 = arith.constant 0 : i32
    %c0_i32_1 = arith.constant 0 : i32
    return %arg0, %c0_i32, %c0_i32_0 : i32, i32, i32
  }
  func.func @transform_1(%arg0: i32) -> (i32, i32, i32) {
    %c0_i32 = arith.constant 0 : i32
    %c0_i32_0 = arith.constant 0 : i32
    %c0_i32_1 = arith.constant 0 : i32
    return %arg0, %c0_i32, %c0_i32_0 : i32, i32, i32
  }
  func.func @transform_2(%arg0: i32) -> (i32, i32, i32) {
    %c0_i32 = arith.constant 0 : i32
    %c0_i32_0 = arith.constant 0 : i32
    %c0_i32_1 = arith.constant 0 : i32
    %c0_i32_2 = arith.constant 0 : i32
    return %c0_i32, %c0_i32_0, %c0_i32_1 : i32, i32, i32
  }
  func.func @transform_3(%arg0: i32) -> (i32, i32) {
    %c0_i32 = arith.constant 0 : i32
    %c0_i32_0 = arith.constant 0 : i32
    %c0_i32_1 = arith.constant 0 : i32
    return %c0_i32, %c0_i32_0 : i32, i32
  }
  func.func @transform_4(%arg0: i32) -> (i32, i32) {
    %c0_i32 = arith.constant 0 : i32
    %c0_i32_0 = arith.constant 0 : i32
    %c0_i32_1 = arith.constant 0 : i32
    return %c0_i32, %c0_i32_0 : i32, i32
  }
  func.func @transform_5(%arg0: i32) -> (i32, i32, i32) {
    %c0_i32 = arith.constant 0 : i32
    %c0_i32_0 = arith.constant 0 : i32
    %c0_i32_1 = arith.constant 0 : i32
    return %arg0, %c0_i32, %c0_i32_0 : i32, i32, i32
  }
}

</mosaic_0001>

<llo_original>
// kernel: dense_corr2d_full.1
$region0: #{dense_corr2d_full.1}
  #allocation0 [shape = 'u32[]', space=smem, size = 0x4, offset = 0x4, fixed_abs, tag = 'smem constant byte address 0x4 - core index']
  #allocation1 [shape = 'u32[144,128]{1,0:T(1,128)}', space=vmem, size = 0x12000, scoped, tag = 'internal scratch']
  #allocation2 [shape = 'bf16[36,362]{1,0:T(8,128)(2,1)}', space=vmem, size = 0x7800, scoped, tag = 'scratch operand']
  #allocation3 [shape = 'bf16[16,362]{1,0:T(16,128)(2,1)}', space=vmem, size = 0x3000, scoped, tag = 'scratch operand']
  %s0 = inlined_call_operand.vmem [shape: bf16[2,4,404], index: 0, kind: input, shape index: {}]
  %s1 = inlined_call_operand.vmem [shape: bf16[2,16,36], index: 1, kind: input, shape index: {}]
  %s2 = inlined_call_operand.vmem [shape: bf16[9,8,16], index: 2, kind: input, shape index: {}]
  %s3 = inlined_call_operand.vmem [shape: f32[8,1], index: 3, kind: input, shape index: {}]
  %s4 = inlined_call_operand.vmem [shape: f32[1,362], index: 4, kind: input, shape index: {}]
  %s5 = inlined_call_operand.vmem [shape: f32[2,8,320], index: 5, kind: output, shape index: {}]
  %s6 = sld [smem:[#allocation0]]
  $region53: #{dense_corr2d_full.1} parent=0
    _
  %s8 = ssub.s32 1, %s6
  %s9 = scalar_select 0, %s8, %s6
  loop: start=0, step=1, limit=4
  $region2: #{dense_corr2d_full.1} parent=0 // loop_pre_header
    _
  $region3: #{dense_corr2d_full.1} parent=0 // loop_header
    %s11 = sphi 0, %s15
    %p12 = scmp.ge.s32.totalorder %s11, 4
    %s21 = sphi 0, %s23
    %s24 = sphi 0, %s21
    %s25 = sphi 0, %s24
    %s41 = sphi 0, %s25
    %s47 = sphi 0, %s49
    %s50 = sphi 0, %s47
    %s51 = sphi 0, %s50
    %s67 = sphi 0, %s51
    %s71 = sphi 0, %s71
    %s73 = sphi 0, %s71
    %s74 = sphi 0, %s73
    %s88 = sphi 0, %s74
    %s92 = sphi 0, %s92
    %s94 = sphi 0, %s92
    %s95 = sphi 0, %s94
    %s109 = sphi 0, %s95
    %s113 = sphi 0, %s113
    %s115 = sphi 0, %s113
    %s116 = sphi 0, %s115
    %s130 = sphi 0, %s116
    %s136 = sphi 0, %s138
    %s139 = sphi 0, %s136
    %s140 = sphi 0, %s139
    %s156 = sphi 0, %s140
  $region4: #{dense_corr2d_full.1} parent=0 // loop_header_branch
    %14 = sbr.rel (%p12) target = $region8
  $region5: #{dense_corr2d_full.1} parent=0 // loop_body
    %s16 = ssub.s32 %s11, 1
    %s17 = ssub.s32 %s11, 2
    %s18 = sadd.s32 %s11, 1
    %s19 = ssub.s32 %s11, %s18
    %p20 = scmp.eq.s32.totalorder %s19, 0
    %s22 = sadd.s32 %s21, 1
    %s23 = scalar_select %p20, %s21, %s22
    %p26 = pneg %p20
    %p27 = scmp.eq.s32.totalorder %s11, 1
    %p28 = por %p26, %p27
    %p29 = scmp.ne.s32.totalorder %s21, %s24
    %p30 = scmp.eq.s32.totalorder %s11, 0
    %p31 = por %p29, %p30
    %p32 = scmp.ne.s32.totalorder %s21, %s24
    %p33 = scmp.eq.s32.totalorder %s16, 1
    %p34 = por %p32, %p33
    %p35 = scmp.ne.s32.totalorder %s24, %s25
    %p36 = scmp.eq.s32.totalorder %s16, 0
    %p37 = por %p35, %p36
    %p38 = scmp.ne.s32.totalorder %s24, %s25
    %p39 = scmp.eq.s32.totalorder %s17, 1
    %p40 = por %p38, %p39
    %p42 = scmp.ne.s32.totalorder %s25, %s41
    %p43 = scmp.eq.s32.totalorder %s17, 0
    %p44 = por %p42, %p43
    %s45 = ssub.s32 %s11, %s18
    %p46 = scmp.eq.s32.totalorder %s45, 0
    %s48 = sadd.s32 %s47, 1
    %s49 = scalar_select %p46, %s47, %s48
    %p52 = pneg %p46
    %p53 = scmp.eq.s32.totalorder %s11, 1
    %p54 = por %p52, %p53
    %p55 = scmp.ne.s32.totalorder %s47, %s50
    %p56 = scmp.eq.s32.totalorder %s11, 0
    %p57 = por %p55, %p56
    %p58 = scmp.ne.s32.totalorder %s47, %s50
    %p59 = scmp.eq.s32.totalorder %s16, 1
    %p60 = por %p58, %p59
    %p61 = scmp.ne.s32.totalorder %s50, %s51
    %p62 = scmp.eq.s32.totalorder %s16, 0
    %p63 = por %p61, %p62
    %p64 = scmp.ne.s32.totalorder %s50, %s51
    %p65 = scmp.eq.s32.totalorder %s17, 1
    %p66 = por %p64, %p65
    %p68 = scmp.ne.s32.totalorder %s51, %s67
    %p69 = scmp.eq.s32.totalorder %s17, 0
    %p70 = por %p68, %p69
    %s72 = sadd.s32 %s71, 1
    %p75 = scmp.eq.s32.totalorder %s11, 1
    %p76 = scmp.ne.s32.totalorder %s71, %s73
    %p77 = scmp.eq.s32.totalorder %s11, 0
    %p78 = por %p76, %p77
    %p79 = scmp.ne.s32.totalorder %s71, %s73
    %p80 = scmp.eq.s32.totalorder %s16, 1
    %p81 = por %p79, %p80
    %p82 = scmp.ne.s32.totalorder %s73, %s74
    %p83 = scmp.eq.s32.totalorder %s16, 0
    %p84 = por %p82, %p83
    %p85 = scmp.ne.s32.totalorder %s73, %s74
    %p86 = scmp.eq.s32.totalorder %s17, 1
    %p87 = por %p85, %p86
    %p89 = scmp.ne.s32.totalorder %s74, %s88
    %p90 = scmp.eq.s32.totalorder %s17, 0
    %p91 = por %p89, %p90
    %s93 = sadd.s32 %s92, 1
    %p96 = scmp.eq.s32.totalorder %s11, 1
    %p97 = scmp.ne.s32.totalorder %s92, %s94
    %p98 = scmp.eq.s32.totalorder %s11, 0
    %p99 = por %p97, %p98
    %p100 = scmp.ne.s32.totalorder %s92, %s94
    %p101 = scmp.eq.s32.totalorder %s16, 1
    %p102 = por %p100, %p101
    %p103 = scmp.ne.s32.totalorder %s94, %s95
    %p104 = scmp.eq.s32.totalorder %s16, 0
    %p105 = por %p103, %p104
    %p106 = scmp.ne.s32.totalorder %s94, %s95
    %p107 = scmp.eq.s32.totalorder %s17, 1
    %p108 = por %p106, %p107
    %p110 = scmp.ne.s32.totalorder %s95, %s109
    %p111 = scmp.eq.s32.totalorder %s17, 0
    %p112 = por %p110, %p111
    %s114 = sadd.s32 %s113, 1
    %p117 = scmp.eq.s32.totalorder %s11, 1
    %p118 = scmp.ne.s32.totalorder %s113, %s115
    %p119 = scmp.eq.s32.totalorder %s11, 0
    %p120 = por %p118, %p119
    %p121 = scmp.ne.s32.totalorder %s113, %s115
    %p122 = scmp.eq.s32.totalorder %s16, 1
    %p123 = por %p121, %p122
    %p124 = scmp.ne.s32.totalorder %s115, %s116
    %p125 = scmp.eq.s32.totalorder %s16, 0
    %p126 = por %p124, %p125
    %p127 = scmp.ne.s32.totalorder %s115, %s116
    %p128 = scmp.eq.s32.totalorder %s17, 1
    %p129 = por %p127, %p128
    %p131 = scmp.ne.s32.totalorder %s116, %s130
    %p132 = scmp.eq.s32.totalorder %s17, 0
    %p133 = por %p131, %p132
    %s134 = ssub.s32 %s11, %s18
    %p135 = scmp.eq.s32.totalorder %s134, 0
    %s137 = sadd.s32 %s136, 1
    %s138 = scalar_select %p135, %s136, %s137
    %p141 = pneg %p135
    %p142 = scmp.eq.s32.totalorder %s11, 1
    %p143 = por %p141, %p142
    %p144 = scmp.ne.s32.totalorder %s136, %s139
    %p145 = scmp.eq.s32.totalorder %s11, 0
    %p146 = por %p144, %p145
    %p147 = scmp.ne.s32.totalorder %s136, %s139
    %p148 = scmp.eq.s32.totalorder %s16, 1
    %p149 = por %p147, %p148
    %p150 = scmp.ne.s32.totalorder %s139, %s140
    %p151 = scmp.eq.s32.totalorder %s16, 0
    %p152 = por %p150, %p151
    %p153 = scmp.ne.s32.totalorder %s139, %s140
    %p154 = scmp.eq.s32.totalorder %s17, 1
    %p155 = por %p153, %p154
    %p157 = scmp.ne.s32.totalorder %s140, %s156
    %p158 = scmp.eq.s32.totalorder %s17, 0
    %p159 = por %p157, %p158
    %p160 = scmp.le.s32.totalorder 1, %s11
    %p161 = scmp.lt.s32.totalorder %s11, 3
    %p162 = pnand %p160, %p161
    %p163 = pneg %p162
    // Predicated region
    $region9: #{dense_corr2d_full.1} parent=5 // pred_check
      _
    $region10: #{dense_corr2d_full.1} parent=5 // pred_check_branch
      %165 = sbr.rel (%p162) target = $region12
    $region11: #{dense_corr2d_full.1} parent=5 // pred_region
      %s166 = ssub.s32 %s11, 1
      // Predicated region
      $region13: #{dense_corr2d_full.1} parent=11 // pred_check
        %p167 = pneg %p84
      $region14: #{dense_corr2d_full.1} parent=11 // pred_check_branch
        %169 = sbr.rel (%p167) target = $region16
      $region15: #{dense_corr2d_full.1} parent=11 // pred_region
        _
      $region16: #{dense_corr2d_full.1} parent=11 // pred_fallthru
        _
      // Predicated region
      $region17: #{dense_corr2d_full.1} parent=11 // pred_check
        %p170 = pneg %p105
      $region18: #{dense_corr2d_full.1} parent=11 // pred_check_branch
        %172 = sbr.rel (%p170) target = $region20
      $region19: #{dense_corr2d_full.1} parent=11 // pred_region
        _
      $region20: #{dense_corr2d_full.1} parent=11 // pred_fallthru
        _
      // Predicated region
      $region21: #{dense_corr2d_full.1} parent=11 // pred_check
        %p173 = pneg %p126
      $region22: #{dense_corr2d_full.1} parent=11 // pred_check_branch
        %175 = sbr.rel (%p173) target = $region24
      $region23: #{dense_corr2d_full.1} parent=11 // pred_region
        _
      $region24: #{dense_corr2d_full.1} parent=11 // pred_fallthru
        _
    $region12: #{dense_corr2d_full.1} parent=5 // pred_fallthru
      _
    %p176 = scmp.lt.s32.totalorder %s11, 2
    // Predicated region
    $region25: #{dense_corr2d_full.1} parent=5 // pred_check
      %p177 = pneg %p176
    $region26: #{dense_corr2d_full.1} parent=5 // pred_check_branch
      %179 = sbr.rel (%p177) target = $region28
    $region27: #{dense_corr2d_full.1} parent=5 // pred_region
      // Predicated region
      $region29: #{dense_corr2d_full.1} parent=27 // pred_check
        %p180 = pneg %p31
      $region30: #{dense_corr2d_full.1} parent=27 // pred_check_branch
        %182 = sbr.rel (%p180) target = $region32
      $region31: #{dense_corr2d_full.1} parent=27 // pred_region
        %p183 = scmp.lt.s32.totalorder %s11, 1
        %s184 = scalar_select %p183, %s11, 1
        %s185 = smul.addr %s184, 4
        %s186 = smul.addr %s185, 2
        %s187 = scalar_lea.vmem %s0, %s186
      $region32: #{dense_corr2d_full.1} parent=27 // pred_fallthru
        _
      // Predicated region
      $region33: #{dense_corr2d_full.1} parent=27 // pred_check
        %p188 = pneg %p57
      $region34: #{dense_corr2d_full.1} parent=27 // pred_check_branch
        %190 = sbr.rel (%p188) target = $region36
      $region35: #{dense_corr2d_full.1} parent=27 // pred_region
        %p191 = scmp.lt.s32.totalorder %s11, 1
        %s192 = scalar_select %p191, %s11, 1
        %s193 = smul.addr %s192, 2
        %s194 = smul.addr %s193, 4
        %s195 = scalar_lea.vmem %s1, %s194
      $region36: #{dense_corr2d_full.1} parent=27 // pred_fallthru
        _
    $region28: #{dense_corr2d_full.1} parent=5 // pred_fallthru
      _
    %p196 = scmp.le.s32.totalorder 1, %s11
    %p197 = scmp.lt.s32.totalorder %s11, 3
    %p198 = pnand %p196, %p197
    %p199 = pneg %p198
    // Predicated region
    $region37: #{dense_corr2d_full.1} parent=5 // pred_check
      _
    $region38: #{dense_corr2d_full.1} parent=5 // pred_check_branch
      %201 = sbr.rel (%p198) target = $region40
    $region39: #{dense_corr2d_full.1} parent=5 // pred_region
      %s202 = ssub.s32 %s11, 1
      %p203 = scmp.lt.s32.totalorder %s16, 1
      %s204 = scalar_select %p203, %s16, 1
      %s205 = smul.addr %s204, 4
      %s206 = smul.addr %s205, 2
      %s207 = scalar_lea.vmem %s0, %s206
      %p208 = pneg %p37
      %p209 = pneg %p34
      %p210 = scmp.lt.s32.totalorder %s16, 1
      %s211 = scalar_select %p210, %s16, 1
      %s212 = smul.addr %s211, 2
      %s213 = smul.addr %s212, 4
      %s214 = scalar_lea.vmem %s1, %s213
      %p215 = pneg %p63
      %p216 = pneg %p60
      %p217 = pneg %p84
      %p218 = pneg %p81
      %p219 = pneg %p105
      %p220 = pneg %p102
      %p221 = pneg %p126
      %p222 = pneg %p123
      %p223 = pneg %p152
      %p224 = pneg %p149
      %p225 = scmp.lt.s32.totalorder %s16, 1
      %s226 = scalar_select %p225, %s16, 1
      %s227 = smul.addr %s226, 3
      %s228 = smul.addr %s227, 8
      %s229 = scalar_lea.vmem %s5, %s228
      %p230 = scmp.lt.s32.totalorder %s16, 1
      %s231 = scalar_select %p230, %s16, 1
      %s232 = smul.addr %s231, 4
      %s233 = smul.addr %s232, 2
      %s234 = scalar_lea.vmem %s0, %s233
      %p235 = scmp.lt.s32.totalorder %s16, 1
      %s236 = scalar_select %p235, %s16, 1
      %s237 = smul.addr %s236, 2
      %s238 = smul.addr %s237, 4
      %s239 = scalar_lea.vmem %s1, %s238
      %p240 = scmp.lt.s32.totalorder %s16, 1
      %s241 = scalar_select %p240, %s16, 1
      %s242 = smul.addr %s241, 3
      %s243 = smul.addr %s242, 8
      %s244 = scalar_lea.vmem %s5, %s243
      %v246 = vld [vmem:[%s234] sm:$0x3f]
      %v248 = vcombine.high %v246, %v246
      %v250 = vunpack.c.l.s4 1983009808
      %v251 = vunpack.c.0.s8 %v250
      %v252 = vlaneseq
      %v253 = vshrl.u32 %v252, 7
      %v254 = vsub.s32 %v251, %v253
      %v255 = vrot.slane %v246, %v254
      %v257 = vunpack.c.l.s4 1983009808
      %v258 = vunpack.c.0.s8 %v257
      %v259 = vlaneseq
      %v260 = vshrl.u32 %v259, 7
      %v261 = vsub.s32 %v258, %v260
      %v262 = vrot.slane %v248, %v261
      %265 = vst [vmem:[#allocation2] sm:$0x33] %v255
      %vm266 = vcmask 861184
      %267 = vst.msk [vmem:[#allocation2 + $0x8] sm:$0x3] %vm266, %v262
      %v268 = vld [vmem:[%s234] sm:$0x3f]
      %v270 = vcombine.low %v268, %v268
      %v272 = vunpack.c.l.s4 1983009808
      %v273 = vunpack.c.0.s8 %v272
      %v274 = vlaneseq
      %v275 = vshrl.u32 %v274, 7
      %v276 = vsub.s32 %v273, %v275
      %v277 = vrot.slane %v270, %v276
      %v279 = vunpack.c.l.s4 1983009808
      %v280 = vunpack.c.0.s8 %v279
      %v281 = vlaneseq
      %v282 = vshrl.u32 %v281, 7
      %v283 = vsub.s32 %v280, %v282
      %v284 = vrot.slane %v268, %v283
      %285 = vrot.lane.b32.xlu0 %v277, 127
      %v286 = vpop.permute.xlu0 %285
      %287 = vrot.lane.b32.xlu0 %v284, 127
      %v288 = vpop.permute.xlu0 %287
      %v289 = vrot.slane %v286, 4
      %v290 = vrot.slane %v288, 4
      %vm291 = vcmask 1043456
      %v292 = vsel %vm291, %v289, %v290
      %vm293 = vcmask 1039360
      %v294 = vsel %vm293, %v286, %v292
      %297 = vst [vmem:[#allocation2] sm:$0xcc] %v294
      %vm298 = vcmask 863234
      %299 = vst.msk [vmem:[#allocation2 + $0x8] sm:$0xc] %vm298, %v288
      %v300 = vld [vmem:[%s234] sm:$0x3f]
      %v302 = vcombine.high %v300, %v300
      %v304 = vunpack.c.l.s4 1983009808
      %v305 = vunpack.c.0.s8 %v304
      %v306 = vlaneseq
      %v307 = vshrl.u32 %v306, 7
      %v308 = vsub.s32 %v305, %v307
      %v309 = vrot.slane %v300, %v308
      %v311 = vunpack.c.l.s4 1983009808
      %v312 = vunpack.c.0.s8 %v311
      %v313 = vlaneseq
      %v314 = vshrl.u32 %v313, 7
      %v315 = vsub.s32 %v312, %v314
      %v316 = vrot.slane %v302, %v315
      %317 = vrot.lane.b32.xlu0 %v309, 126
      %v318 = vpop.permute.xlu0 %317
      %319 = vrot.lane.b32.xlu0 %v316, 126
      %v320 = vpop.permute.xlu0 %319
      %v321 = vrot.slane %v318, 4
      %v322 = vrot.slane %v320, 4
      %v323 = vsel %vm291, %v321, %v322
      %vm324 = vcmask 1031168
      %v325 = vsel %vm324, %v318, %v323
      %328 = vst [vmem:[#allocation2 + $0xc] sm:$0x33] %v325
      %329 = vst.msk [vmem:[#allocation2 + $0x14] sm:$0x3] %vm266, %v320
      %v330 = vld [vmem:[%s234] sm:$0x3f]
      %v332 = vcombine.low %v330, %v330
      %v334 = vunpack.c.l.s4 1983009808
      %v335 = vunpack.c.0.s8 %v334
      %v336 = vlaneseq
      %v337 = vshrl.u32 %v336, 7
      %v338 = vsub.s32 %v335, %v337
      %v339 = vrot.slane %v332, %v338
      %v341 = vunpack.c.l.s4 1983009808
      %v342 = vunpack.c.0.s8 %v341
      %v343 = vlaneseq
      %v344 = vshrl.u32 %v343, 7
      %v345 = vsub.s32 %v342, %v344
      %v346 = vrot.slane %v330, %v345
      %347 = vrot.lane.b32.xlu0 %v339, 108
      %v348 = vpop.permute.xlu0 %347
      %349 = vrot.lane.b32.xlu0 %v346, 108
      %v350 = vpop.permute.xlu0 %349
      %v351 = vrot.slane %v348, 4
      %v352 = vrot.slane %v350, 4
      %v353 = vsel %vm291, %v351, %v352
      %vm354 = vcmask 883712
      %v355 = vsel %vm354, %v348, %v353
      %358 = vst [vmem:[#allocation2 + $0xc] sm:$0xcc] %v355
      %359 = vst.msk [vmem:[#allocation2 + $0x14] sm:$0xc] %vm298, %v350
      %v360 = vld [vmem:[%s234] sm:$0x3f]
      %v362 = vcombine.high %v360, %v360
      %v364 = vunpack.c.l.s4 1983009808
      %v365 = vunpack.c.0.s8 %v364
      %v366 = vlaneseq
      %v367 = vshrl.u32 %v366, 7
      %v368 = vsub.s32 %v365, %v367
      %v369 = vrot.slane %v360, %v368
      %v371 = vunpack.c.l.s4 1983009808
      %v372 = vunpack.c.0.s8 %v371
      %v373 = vlaneseq
      %v374 = vshrl.u32 %v373, 7
      %v375 = vsub.s32 %v372, %v374
      %v376 = vrot.slane %v362, %v375
      %377 = vrot.lane.b32.xlu0 %v369, 107
      %v378 = vpop.permute.xlu0 %377
      %379 = vrot.lane.b32.xlu0 %v376, 107
      %v380 = vpop.permute.xlu0 %379
      %v381 = vrot.slane %v378, 4
      %v382 = vrot.slane %v380, 4
      %v383 = vsel %vm291, %v381, %v382
      %vm384 = vcmask 875520
      %v385 = vsel %vm384, %v378, %v383
      %388 = vst [vmem:[#allocation2 + $0x18] sm:$0x33] %v385
      %389 = vst.msk [vmem:[#allocation2 + $0x20] sm:$0x3] %vm266, %v380
      %v390 = vld [vmem:[%s234] sm:$0x3f]
      %v392 = vcombine.low %v390, %v390
      %v394 = vunpack.c.l.s4 1983009808
      %v395 = vunpack.c.0.s8 %v394
      %v396 = vlaneseq
      %v397 = vshrl.u32 %v396, 7
      %v398 = vsub.s32 %v395, %v397
      %v399 = vrot.slane %v392, %v398
      %v401 = vunpack.c.l.s4 1983009808
      %v402 = vunpack.c.0.s8 %v401
      %v403 = vlaneseq
      %v404 = vshrl.u32 %v403, 7
      %v405 = vsub.s32 %v402, %v404
      %v406 = vrot.slane %v390, %v405
      %407 = vrot.lane.b32.xlu0 %v399, 106
      %v408 = vpop.permute.xlu0 %407
      %409 = vrot.lane.b32.xlu0 %v406, 106
      %v410 = vpop.permute.xlu0 %409
      %v411 = vrot.slane %v408, 4
      %v412 = vrot.slane %v410, 4
      %v413 = vsel %vm291, %v411, %v412
      %vm414 = vcmask 867328
      %v415 = vsel %vm414, %v408, %v413
      %418 = vst [vmem:[#allocation2 + $0x18] sm:$0xcc] %v415
      %419 = vst.msk [vmem:[#allocation2 + $0x20] sm:$0xc] %vm298, %v410
      %v420 = vld [vmem:[%s234] sm:$0xff]
      %v422 = vcombine.high %v420, %v420
      %v424 = vunpack.c.l.s4 1983009808
      %v425 = vunpack.c.0.s8 %v424
      %v426 = vlaneseq
      %v427 = vshrl.u32 %v426, 7
      %v428 = vsub.s32 %v425, %v427
      %v429 = vrot.slane %v420, %v428
      %v431 = vunpack.c.l.s4 1983009808
      %v432 = vunpack.c.0.s8 %v431
      %v433 = vlaneseq
      %v434 = vshrl.u32 %v433, 7
      %v435 = vsub.s32 %v432, %v434
      %v436 = vrot.slane %v422, %v435
      %437 = vrot.lane.b32.xlu0 %v429, 88
      %v438 = vpop.permute.xlu0 %437
      %439 = vrot.lane.b32.xlu0 %v436, 88
      %v440 = vpop.permute.xlu0 %439
      %v441 = vrot.slane %v438, 4
      %v442 = vrot.slane %v440, 4
      %v443 = vsel %vm291, %v441, %v442
      %vm444 = vcmask 719872
      %v445 = vsel %vm444, %v438, %v443
      %v446 = vsel %vm444, %v440, %v442
      %449 = vst [vmem:[#allocation2 + $0x24] sm:$0x33] %v445
      %450 = vst.msk [vmem:[#allocation2 + $0x2c] sm:$0x3] %vm266, %v446
      %v451 = vld [vmem:[%s234] sm:$0xff]
      %v453 = vcombine.low %v451, %v451
      %v455 = vunpack.c.l.s4 1983009808
      %v456 = vunpack.c.0.s8 %v455
      %v457 = vlaneseq
      %v458 = vshrl.u32 %v457, 7
      %v459 = vsub.s32 %v456, %v458
      %v460 = vrot.slane %v453, %v459
      %v462 = vunpack.c.l.s4 1983009808
      %v463 = vunpack.c.0.s8 %v462
      %v464 = vlaneseq
      %v465 = vshrl.u32 %v464, 7
      %v466 = vsub.s32 %v463, %v465
      %v467 = vrot.slane %v451, %v466
      %468 = vrot.lane.b32.xlu0 %v460, 87
      %v469 = vpop.permute.xlu0 %468
      %470 = vrot.lane.b32.xlu0 %v467, 87
      %v471 = vpop.permute.xlu0 %470
      %v472 = vrot.slane %v469, 4
      %v473 = vrot.slane %v471, 4
      %v474 = vsel %vm291, %v472, %v473
      %vm475 = vcmask 711680
      %v476 = vsel %vm475, %v469, %v474
      %v477 = vsel %vm475, %v471, %v473
      %480 = vst [vmem:[#allocation2 + $0x24] sm:$0xcc] %v476
      %481 = vst.msk [vmem:[#allocation2 + $0x2c] sm:$0xc] %vm298, %v477
      %v482 = vld [vmem:[%s234] sm:$0xff]
      %v484 = vcombine.high %v482, %v482
      %v486 = vunpack.c.l.s4 1983009808
      %v487 = vunpack.c.0.s8 %v486
      %v488 = vlaneseq
      %v489 = vshrl.u32 %v488, 7
      %v490 = vsub.s32 %v487, %v489
      %v491 = vrot.slane %v482, %v490
      %v493 = vunpack.c.l.s4 1983009808
      %v494 = vunpack.c.0.s8 %v493
      %v495 = vlaneseq
      %v496 = vshrl.u32 %v495, 7
      %v497 = vsub.s32 %v494, %v496
      %v498 = vrot.slane %v484, %v497
      %499 = vrot.lane.b32.xlu0 %v491, 86
      %v500 = vpop.permute.xlu0 %499
      %501 = vrot.lane.b32.xlu0 %v498, 86
      %v502 = vpop.permute.xlu0 %501
      %v503 = vrot.slane %v500, 4
      %v504 = vrot.slane %v502, 4
      %v505 = vsel %vm291, %v503, %v504
      %vm506 = vcmask 703488
      %v507 = vsel %vm506, %v500, %v505
      %v508 = vsel %vm506, %v502, %v504
      %511 = vst [vmem:[#allocation2 + $0x30] sm:$0x33] %v507
      %512 = vst.msk [vmem:[#allocation2 + $0x38] sm:$0x3] %vm266, %v508
      %v513 = vld [vmem:[%s239] sm:$0xf]
      %v514 = vld [vmem:[%s239 + $0x4] sm:$0xf]
      %v515 = vld [vmem:[#allocation2] sm:$0xff]
      %v516 = vld [vmem:[#allocation2 + $0x8] sm:$0xf]
      %v517 = vld [vmem:[#allocation2 + $0xc] sm:$0xff]
      %v518 = vld [vmem:[#allocation2 + $0x14] sm:$0xf]
      %v519 = vld [vmem:[#allocation2 + $0x18] sm:$0xff]
      %v520 = vld [vmem:[#allocation2 + $0x20] sm:$0xf]
      %v521 = vld [vmem:[#allocation2 + $0x24] sm:$0xff]
      %v522 = vld [vmem:[#allocation2 + $0x2c] sm:$0xf]
      %v523 = vld [vmem:[#allocation2 + $0x30] sm:$0x33]
      %v524 = vld [vmem:[#allocation2 + $0x38] sm:$0x3]
      %v527 = vunpack.c.l.b16 %v513
      %v528 = vunpack.c.l.b16 %v514
      %v529 = vpack.c.b16 %v528, %v527
      %v540 = vunpack.c.l.b16 %v515
      %v541 = vunpack.c.h.b16 %v515
      %v542 = vunpack.c.l.b16 %v516
      %v543 = vunpack.c.l.b16 %v517
      %v544 = vunpack.c.h.b16 %v517
      %v545 = vunpack.c.l.b16 %v518
      %v546 = vunpack.c.l.b16 %v519
      %v547 = vunpack.c.h.b16 %v519
      %v548 = vunpack.c.l.b16 %v520
      %v549 = vunpack.c.l.b16 %v521
      %v550 = vunpack.c.h.b16 %v521
      %v551 = vunpack.c.l.b16 %v522
      %v552 = vunpack.c.l.b16 %v523
      %v553 = vunpack.c.h.b16 %v523
      %v554 = vunpack.c.l.b16 %v524
      %v555 = vpack.c.b16 %v543, %v540
      %v556 = vpack.c.b16 %v544, %v541
      %v557 = vpack.c.b16 %v545, %v542
      %v558 = vpack.c.b16 %v549, %v546
      %v559 = vpack.c.b16 %v550, %v547
      %v560 = vpack.c.b16 %v551, %v548
      %v561 = vpack.c.b16 %v552, %v552
      %v562 = vpack.c.b16 %v553, %v553
      %v563 = vpack.c.b16 %v554, %v554
      %vm570 = vcmask 293888
      %v572 = vsel %vm570, %v529, 0
      %vm574 = vcmask 1041408
      %v576 = vsel %vm574, %v561, 0
      %v579 = vsel %vm574, %v562, 0
      %v582 = vsel %vm574, %v563, 0
      %584 = vmatprep.subr.bf16.mxu0 %v556
      %585 = vmatpush1.bf16.msra.mxu0 %v555
      %586 = vmatprep.subr.bf16.mxu0 %v559
      %587 = vmatpush1.bf16.msra.mxu0 %v558
      %588 = vmatprep.subr.bf16.mxu0 %v579
      %589 = vmatpush1.bf16.msra.mxu0 %v576
      %590 = vmatprep.subr.bf16.mxu0 0
      %591 = vmatpush1.bf16.msra.mxu0 0
      %592 = vmatprep.subr.bf16.mxu0 0
      %593 = vmatpush1.bf16.msra.mxu0 0
      %594 = vmatprep.subr.bf16.mxu0 0
      %595 = vmatpush1.bf16.msra.mxu0 0
      %596 = vmatprep.subr.bf16.mxu0 0
      %597 = vmatpush1.bf16.msra.mxu0 0
      %598 = vmatprep.subr.bf16.mxu0 0
      %599 = vmatpush1.bf16.msra.mxu0 0
      %600 = vmatprep.subr.bf16.mxu0 0
      %601 = vmatpush1.bf16.msra.mxu0 0
      %602 = vmatprep.subr.bf16.mxu0 0
      %603 = vmatpush1.bf16.msra.mxu0 0
      %604 = vmatprep.subr.bf16.mxu0 0
      %605 = vmatpush1.bf16.msra.mxu0 0
      %606 = vmatprep.subr.bf16.mxu0 0
      %607 = vmatpush1.bf16.msra.mxu0 0
      %608 = vmatprep.subr.bf16.mxu0 0
      %609 = vmatpush1.bf16.msra.mxu0 0
      %610 = vmatprep.subr.bf16.mxu0 0
      %611 = vmatpush1.bf16.msra.mxu0 0
      %612 = vmatprep.subr.bf16.mxu0 0
      %613 = vmatpush1.bf16.msra.mxu0 0
      %614 = vmatprep.subr.bf16.mxu0 0
      %615 = vmatpush1.bf16.msra.mxu0 0
      %616 = vmatprep.mubr.bf16.mxu0 0
      %617 = vmatmul.mubr.bf16.gmra.mrb[0].mxu0 %v572
      %v618 = vpop.f32.mrb[0].mxu0
      %v619 = vadd.f32 0.0, %v618
      %v620 = vpop.f32.mrb[0].mxu0
      %v621 = vadd.f32 0.0, %v620
      %v622 = vpop.f32.mrb[0].mxu0
      %v623 = vadd.f32 0.0, %v622
      %v624 = vpop.f32.mrb[0].mxu0
      %v625 = vadd.f32 0.0, %v624
      %626 = vdwg.mxu0
      %627 = vmatprep.subr.bf16.mxu0 0
      %628 = vmatpush1.bf16.msra.mxu0 %v557
      %629 = vmatprep.subr.bf16.mxu0 0
      %630 = vmatpush1.bf16.msra.mxu0 %v560
      %631 = vmatprep.subr.bf16.mxu0 0
      %632 = vmatpush1.bf16.msra.mxu0 %v582
      %633 = vmatprep.subr.bf16.mxu0 0
      %634 = vmatpush1.bf16.msra.mxu0 0
      %635 = vmatprep.subr.bf16.mxu0 0
      %636 = vmatpush1.bf16.msra.mxu0 0
      %637 = vmatprep.subr.bf16.mxu0 0
      %638 = vmatpush1.bf16.msra.mxu0 0
      %639 = vmatprep.subr.bf16.mxu0 0
      %640 = vmatpush1.bf16.msra.mxu0 0
      %641 = vmatprep.subr.bf16.mxu0 0
      %642 = vmatpush1.bf16.msra.mxu0 0
      %643 = vmatprep.subr.bf16.mxu0 0
      %644 = vmatpush1.bf16.msra.mxu0 0
      %645 = vmatprep.subr.bf16.mxu0 0
      %646 = vmatpush1.bf16.msra.mxu0 0
      %647 = vmatprep.subr.bf16.mxu0 0
      %648 = vmatpush1.bf16.msra.mxu0 0
      %649 = vmatprep.subr.bf16.mxu0 0
      %650 = vmatpush1.bf16.msra.mxu0 0
      %651 = vmatprep.subr.bf16.mxu0 0
      %652 = vmatpush1.bf16.msra.mxu0 0
      %653 = vmatprep.subr.bf16.mxu0 0
      %654 = vmatpush1.bf16.msra.mxu0 0
      %655 = vmatprep.subr.bf16.mxu0 0
      %656 = vmatpush1.bf16.msra.mxu0 0
      %657 = vmatprep.subr.bf16.mxu0 0
      %658 = vmatpush1.bf16.msra.mxu0 0
      %659 = vmatprep.mubr.bf16.mxu0 0
      %660 = vmatmul.mubr.bf16.gmra.mrb[0].mxu0 %v572
      %v661 = vpop.f32.mrb[0].mxu0
      %v662 = vadd.f32 0.0, %v661
      %v663 = vpop.f32.mrb[0].mxu0
      %v664 = vpop.f32.mrb[0].mxu0
      %v665 = vadd.f32 0.0, %v664
      %v666 = vpop.f32.mrb[0].mxu0
      %667 = vdwg.mxu0
      %v668 = vld [vmem:[%s4] sm:$0x7]
      %v670 = vlaneseq
      %v671 = vshrl.u32 %v670, 7
      %v672 = vsub.s32 0, %v671
      %v673 = vrot.slane %v668, %v672
      %v674 = vlaneseq
      %v675 = vshrl.u32 %v674, 7
      %v676 = vsub.s32 1, %v675
      %v677 = vrot.slane %v668, %v676
      %v678 = vlaneseq
      %v679 = vshrl.u32 %v678, 7
      %v680 = vsub.s32 2, %v679
      %v681 = vrot.slane %v668, %v680
      %v685 = vmul.f32 %v619, %v673
      %v686 = vmul.f32 %v621, %v677
      %v687 = vmul.f32 %v662, %v681
      %v688 = vmul.f32 %v623, %v673
      %v689 = vmul.f32 %v625, %v677
      %v690 = vmul.f32 %v665, %v681
      %v691 = vpack.c.bf16 %v688, %v685
      %v692 = vpack.c.bf16 %v689, %v686
      %v693 = vpack.c.bf16 %v690, %v687
      %694 = vst [vmem:[#allocation3] sm:$0xff] %v691
      %695 = vst [vmem:[#allocation3 + $0x8] sm:$0xff] %v692
      %vm696 = vcmask 867328
      %697 = vst.msk [vmem:[#allocation3 + $0x10] sm:$0xff] %vm696, %v693
      %v698 = vld [vmem:[%s3] sm:$0xff]
      %700 = vset.pattern.permute.xlu0 0
      %701 = vperm.xlu0 %700, %v698
      %v702 = vpop.permute.xlu0 %701
      %v704 = vld [vmem:[%s2] sm:$0xf]
      %v705 = vld [vmem:[#allocation3] sm:$0xff]
      %v706 = vld [vmem:[#allocation3 + $0x8] sm:$0xff]
      %v707 = vld [vmem:[#allocation3 + $0x10] sm:$0xff]
      %vm708 = vcmask 130048
      %v710 = vsel %vm708, %v704, 0
      %712 = vmatprep.subr.bf16.mxu0 %v706
      %713 = vmatpush1.bf16.msra.mxu0 %v705
      %714 = vmatprep.subr.bf16.mxu0 0
      %715 = vmatpush1.bf16.msra.mxu0 0
      %716 = vmatprep.subr.bf16.mxu0 0
      %717 = vmatpush1.bf16.msra.mxu0 0
      %718 = vmatprep.subr.bf16.mxu0 0
      %719 = vmatpush1.bf16.msra.mxu0 0
      %720 = vmatprep.subr.bf16.mxu0 0
      %721 = vmatpush1.bf16.msra.mxu0 0
      %722 = vmatprep.subr.bf16.mxu0 0
      %723 = vmatpush1.bf16.msra.mxu0 0
      %724 = vmatprep.subr.bf16.mxu0 0
      %725 = vmatpush1.bf16.msra.mxu0 0
      %726 = vmatprep.subr.bf16.mxu0 0
      %727 = vmatpush1.bf16.msra.mxu0 0
      %728 = vmatprep.subr.bf16.mxu0 0
      %729 = vmatpush1.bf16.msra.mxu0 0
      %730 = vmatprep.subr.bf16.mxu0 0
      %731 = vmatpush1.bf16.msra.mxu0 0
      %732 = vmatprep.subr.bf16.mxu0 0
      %733 = vmatpush1.bf16.msra.mxu0 0
      %734 = vmatprep.subr.bf16.mxu0 0
      %735 = vmatpush1.bf16.msra.mxu0 0
      %736 = vmatprep.subr.bf16.mxu0 0
      %737 = vmatpush1.bf16.msra.mxu0 0
      %738 = vmatprep.subr.bf16.mxu0 0
      %739 = vmatpush1.bf16.msra.mxu0 0
      %740 = vmatprep.subr.bf16.mxu0 0
      %741 = vmatpush1.bf16.msra.mxu0 0
      %742 = vmatprep.subr.bf16.mxu0 0
      %743 = vmatpush1.bf16.msra.mxu0 0
      %744 = vmatprep.mubr.bf16.mxu0 0
      %745 = vmatmul.mubr.bf16.gmra.mrb[0].mxu0 %v710
      %v746 = vpop.f32.mrb[0].mxu0
      %v747 = vadd.f32 0.0, %v746
      %v748 = vpop.f32.mrb[0].mxu0
      %v749 = vadd.f32 0.0, %v748
      %v750 = vpop.f32.mrb[0].mxu0
      %v751 = vpop.f32.mrb[0].mxu0
      %752 = vdwg.mxu0
      %753 = vmatprep.subr.bf16.mxu0 0
      %754 = vmatpush1.bf16.msra.mxu0 %v707
      %755 = vmatprep.subr.bf16.mxu0 0
      %756 = vmatpush1.bf16.msra.mxu0 0
      %757 = vmatprep.subr.bf16.mxu0 0
      %758 = vmatpush1.bf16.msra.mxu0 0
      %759 = vmatprep.subr.bf16.mxu0 0
      %760 = vmatpush1.bf16.msra.mxu0 0
      %761 = vmatprep.subr.bf16.mxu0 0
      %762 = vmatpush1.bf16.msra.mxu0 0
      %763 = vmatprep.subr.bf16.mxu0 0
      %764 = vmatpush1.bf16.msra.mxu0 0
      %765 = vmatprep.subr.bf16.mxu0 0
      %766 = vmatpush1.bf16.msra.mxu0 0
      %767 = vmatprep.subr.bf16.mxu0 0
      %768 = vmatpush1.bf16.msra.mxu0 0
      %769 = vmatprep.subr.bf16.mxu0 0
      %770 = vmatpush1.bf16.msra.mxu0 0
      %771 = vmatprep.subr.bf16.mxu0 0
      %772 = vmatpush1.bf16.msra.mxu0 0
      %773 = vmatprep.subr.bf16.mxu0 0
      %774 = vmatpush1.bf16.msra.mxu0 0
      %775 = vmatprep.subr.bf16.mxu0 0
      %776 = vmatpush1.bf16.msra.mxu0 0
      %777 = vmatprep.subr.bf16.mxu0 0
      %778 = vmatpush1.bf16.msra.mxu0 0
      %779 = vmatprep.subr.bf16.mxu0 0
      %780 = vmatpush1.bf16.msra.mxu0 0
      %781 = vmatprep.subr.bf16.mxu0 0
      %782 = vmatpush1.bf16.msra.mxu0 0
      %783 = vmatprep.subr.bf16.mxu0 0
      %784 = vmatpush1.bf16.msra.mxu0 0
      %785 = vmatprep.mubr.bf16.mxu0 0
      %786 = vmatmul.mubr.bf16.gmra.mrb[0].mxu0 %v710
      %v787 = vpop.f32.mrb[0].mxu0
      %v788 = vadd.f32 0.0, %v787
      %v789 = vpop.f32.mrb[0].mxu0
      %v790 = vpop.f32.mrb[0].mxu0
      %v791 = vpop.f32.mrb[0].mxu0
      %792 = vdwg.mxu0
      %v793 = vadd.f32 %v702, %v747
      %v794 = vadd.f32 %v702, %v749
      %v795 = vadd.f32 %v702, %v788
      %s796 = scalar_lea.vmem %s2, 4
      %v797 = vld [vmem:[%s796] sm:$0xf]
      %801 = vrot.lane.b32.xlu0 %v705, 127
      %v802 = vpop.permute.xlu0 %801
      %803 = vrot.lane.b32.xlu0 %v706, 127
      %v804 = vpop.permute.xlu0 %803
      %805 = vrot.lane.b32.xlu0 %v707, 127
      %v806 = vpop.permute.xlu0 %805
      %v807 = vsel %vm293, %v802, %v804
      %v808 = vsel %vm293, %v804, %v806
      %v813 = vsel %vm708, %v797, 0
      %815 = vmatprep.subr.bf16.mxu0 %v808
      %816 = vmatpush1.bf16.msra.mxu0 %v807
      %817 = vmatprep.subr.bf16.mxu0 0
      %818 = vmatpush1.bf16.msra.mxu0 0
      %819 = vmatprep.subr.bf16.mxu0 0
      %820 = vmatpush1.bf16.msra.mxu0 0
      %821 = vmatprep.subr.bf16.mxu0 0
      %822 = vmatpush1.bf16.msra.mxu0 0
      %823 = vmatprep.subr.bf16.mxu0 0
      %824 = vmatpush1.bf16.msra.mxu0 0
      %825 = vmatprep.subr.bf16.mxu0 0
      %826 = vmatpush1.bf16.msra.mxu0 0
      %827 = vmatprep.subr.bf16.mxu0 0
      %828 = vmatpush1.bf16.msra.mxu0 0
      %829 = vmatprep.subr.bf16.mxu0 0
      %830 = vmatpush1.bf16.msra.mxu0 0
      %831 = vmatprep.subr.bf16.mxu0 0
      %832 = vmatpush1.bf16.msra.mxu0 0
      %833 = vmatprep.subr.bf16.mxu0 0
      %834 = vmatpush1.bf16.msra.mxu0 0
      %835 = vmatprep.subr.bf16.mxu0 0
      %836 = vmatpush1.bf16.msra.mxu0 0
      %837 = vmatprep.subr.bf16.mxu0 0
      %838 = vmatpush1.bf16.msra.mxu0 0
      %839 = vmatprep.subr.bf16.mxu0 0
      %840 = vmatpush1.bf16.msra.mxu0 0
      %841 = vmatprep.subr.bf16.mxu0 0
      %842 = vmatpush1.bf16.msra.mxu0 0
      %843 = vmatprep.subr.bf16.mxu0 0
      %844 = vmatpush1.bf16.msra.mxu0 0
      %845 = vmatprep.subr.bf16.mxu0 0
      %846 = vmatpush1.bf16.msra.mxu0 0
      %847 = vmatprep.mubr.bf16.mxu0 0
      %848 = vmatmul.mubr.bf16.gmra.mrb[0].mxu0 %v813
      %v849 = vpop.f32.mrb[0].mxu0
      %v850 = vadd.f32 0.0, %v849
      %v851 = vpop.f32.mrb[0].mxu0
      %v852 = vadd.f32 0.0, %v851
      %v853 = vpop.f32.mrb[0].mxu0
      %v854 = vpop.f32.mrb[0].mxu0
      %855 = vdwg.mxu0
      %856 = vmatprep.subr.bf16.mxu0 0
      %857 = vmatpush1.bf16.msra.mxu0 %v806
      %858 = vmatprep.subr.bf16.mxu0 0
      %859 = vmatpush1.bf16.msra.mxu0 0
      %860 = vmatprep.subr.bf16.mxu0 0
      %861 = vmatpush1.bf16.msra.mxu0 0
      %862 = vmatprep.subr.bf16.mxu0 0
      %863 = vmatpush1.bf16.msra.mxu0 0
      %864 = vmatprep.subr.bf16.mxu0 0
      %865 = vmatpush1.bf16.msra.mxu0 0
      %866 = vmatprep.subr.bf16.mxu0 0
      %867 = vmatpush1.bf16.msra.mxu0 0
      %868 = vmatprep.subr.bf16.mxu0 0
      %869 = vmatpush1.bf16.msra.mxu0 0
      %870 = vmatprep.subr.bf16.mxu0 0
      %871 = vmatpush1.bf16.msra.mxu0 0
      %872 = vmatprep.subr.bf16.mxu0 0
      %873 = vmatpush1.bf16.msra.mxu0 0
      %874 = vmatprep.subr.bf16.mxu0 0
      %875 = vmatpush1.bf16.msra.mxu0 0
      %876 = vmatprep.subr.bf16.mxu0 0
      %877 = vmatpush1.bf16.msra.mxu0 0
      %878 = vmatprep.subr.bf16.mxu0 0
      %879 = vmatpush1.bf16.msra.mxu0 0
      %880 = vmatprep.subr.bf16.mxu0 0
      %881 = vmatpush1.bf16.msra.mxu0 0
      %882 = vmatprep.subr.bf16.mxu0 0
      %883 = vmatpush1.bf16.msra.mxu0 0
      %884 = vmatprep.subr.bf16.mxu0 0
      %885 = vmatpush1.bf16.msra.mxu0 0
      %886 = vmatprep.subr.bf16.mxu0 0
      %887 = vmatpush1.bf16.msra.mxu0 0
      %888 = vmatprep.mubr.bf16.mxu0 0
      %889 = vmatmul.mubr.bf16.gmra.mrb[0].mxu0 %v813
      %v890 = vpop.f32.mrb[0].mxu0
      %v891 = vadd.f32 0.0, %v890
      %v892 = vpop.f32.mrb[0].mxu0
      %v893 = vpop.f32.mrb[0].mxu0
      %v894 = vpop.f32.mrb[0].mxu0
      %895 = vdwg.mxu0
      %v896 = vadd.f32 %v793, %v850
      %v897 = vadd.f32 %v794, %v852
      %v898 = vadd.f32 %v795, %v891
      %s899 = scalar_lea.vmem %s2, 8
      %v900 = vld [vmem:[%s899] sm:$0xf]
      %901 = vrot.lane.b32.xlu0 %v705, 126
      %v902 = vpop.permute.xlu0 %901
      %903 = vrot.lane.b32.xlu0 %v706, 126
      %v904 = vpop.permute.xlu0 %903
      %905 = vrot.lane.b32.xlu0 %v707, 126
      %v906 = vpop.permute.xlu0 %905
      %v907 = vsel %vm324, %v902, %v904
      %v908 = vsel %vm324, %v904, %v906
      %v913 = vsel %vm708, %v900, 0
      %915 = vmatprep.subr.bf16.mxu0 %v908
      %916 = vmatpush1.bf16.msra.mxu0 %v907
      %917 = vmatprep.subr.bf16.mxu0 0
      %918 = vmatpush1.bf16.msra.mxu0 0
      %919 = vmatprep.subr.bf16.mxu0 0
      %920 = vmatpush1.bf16.msra.mxu0 0
      %921 = vmatprep.subr.bf16.mxu0 0
      %922 = vmatpush1.bf16.msra.mxu0 0
      %923 = vmatprep.subr.bf16.mxu0 0
      %924 = vmatpush1.bf16.msra.mxu0 0
      %925 = vmatprep.subr.bf16.mxu0 0
      %926 = vmatpush1.bf16.msra.mxu0 0
      %927 = vmatprep.subr.bf16.mxu0 0
      %928 = vmatpush1.bf16.msra.mxu0 0
      %929 = vmatprep.subr.bf16.mxu0 0
      %930 = vmatpush1.bf16.msra.mxu0 0
      %931 = vmatprep.subr.bf16.mxu0 0
      %932 = vmatpush1.bf16.msra.mxu0 0
      %933 = vmatprep.subr.bf16.mxu0 0
      %934 = vmatpush1.bf16.msra.mxu0 0
      %935 = vmatprep.subr.bf16.mxu0 0
      %936 = vmatpush1.bf16.msra.mxu0 0
      %937 = vmatprep.subr.bf16.mxu0 0
      %938 = vmatpush1.bf16.msra.mxu0 0
      %939 = vmatprep.subr.bf16.mxu0 0
      %940 = vmatpush1.bf16.msra.mxu0 0
      %941 = vmatprep.subr.bf16.mxu0 0
      %942 = vmatpush1.bf16.msra.mxu0 0
      %943 = vmatprep.subr.bf16.mxu0 0
      %944 = vmatpush1.bf16.msra.mxu0 0
      %945 = vmatprep.subr.bf16.mxu0 0
      %946 = vmatpush1.bf16.msra.mxu0 0
      %947 = vmatprep.mubr.bf16.mxu0 0
      %948 = vmatmul.mubr.bf16.gmra.mrb[0].mxu0 %v913
      %v949 = vpop.f32.mrb[0].mxu0
      %v950 = vadd.f32 0.0, %v949
      %v951 = vpop.f32.mrb[0].mxu0
      %v952 = vadd.f32 0.0, %v951
      %v953 = vpop.f32.mrb[0].mxu0
      %v954 = vpop.f32.mrb[0].mxu0
      %955 = vdwg.mxu0
      %956 = vmatprep.subr.bf16.mxu0 0
      %957 = vmatpush1.bf16.msra.mxu0 %v906
      %958 = vmatprep.subr.bf16.mxu0 0
      %959 = vmatpush1.bf16.msra.mxu0 0
      %960 = vmatprep.subr.bf16.mxu0 0
      %961 = vmatpush1.bf16.msra.mxu0 0
      %962 = vmatprep.subr.bf16.mxu0 0
      %963 = vmatpush1.bf16.msra.mxu0 0
      %964 = vmatprep.subr.bf16.mxu0 0
      %965 = vmatpush1.bf16.msra.mxu0 0
      %966 = vmatprep.subr.bf16.mxu0 0
      %967 = vmatpush1.bf16.msra.mxu0 0
      %968 = vmatprep.subr.bf16.mxu0 0
      %969 = vmatpush1.bf16.msra.mxu0 0
      %970 = vmatprep.subr.bf16.mxu0 0
      %971 = vmatpush1.bf16.msra.mxu0 0
      %972 = vmatprep.subr.bf16.mxu0 0
      %973 = vmatpush1.bf16.msra.mxu0 0
      %974 = vmatprep.subr.bf16.mxu0 0
      %975 = vmatpush1.bf16.msra.mxu0 0
      %976 = vmatprep.subr.bf16.mxu0 0
      %977 = vmatpush1.bf16.msra.mxu0 0
      %978 = vmatprep.subr.bf16.mxu0 0
      %979 = vmatpush1.bf16.msra.mxu0 0
      %980 = vmatprep.subr.bf16.mxu0 0
      %981 = vmatpush1.bf16.msra.mxu0 0
      %982 = vmatprep.subr.bf16.mxu0 0
      %983 = vmatpush1.bf16.msra.mxu0 0
      %984 = vmatprep.subr.bf16.mxu0 0
      %985 = vmatpush1.bf16.msra.mxu0 0
      %986 = vmatprep.subr.bf16.mxu0 0
      %987 = vmatpush1.bf16.msra.mxu0 0
      %988 = vmatprep.mubr.bf16.mxu0 0
      %989 = vmatmul.mubr.bf16.gmra.mrb[0].mxu0 %v913
      %v990 = vpop.f32.mrb[0].mxu0
      %v991 = vadd.f32 0.0, %v990
      %v992 = vpop.f32.mrb[0].mxu0
      %v993 = vpop.f32.mrb[0].mxu0
      %v994 = vpop.f32.mrb[0].mxu0
      %995 = vdwg.mxu0
      %v996 = vadd.f32 %v896, %v950
      %v997 = vadd.f32 %v897, %v952
      %v998 = vadd.f32 %v898, %v991
      %s999 = scalar_lea.vmem %s2, 12
      %v1000 = vld [vmem:[%s999] sm:$0xf]
      %1001 = vrot.lane.b32.xlu0 %v705, 108
      %v1002 = vpop.permute.xlu0 %1001
      %1003 = vrot.lane.b32.xlu0 %v706, 108
      %v1004 = vpop.permute.xlu0 %1003
      %1005 = vrot.lane.b32.xlu0 %v707, 108
      %v1006 = vpop.permute.xlu0 %1005
      %v1007 = vsel %vm354, %v1002, %v1004
      %v1008 = vsel %vm354, %v1004, %v1006
      %v1013 = vsel %vm708, %v1000, 0
      %1015 = vmatprep.subr.bf16.mxu0 %v1008
      %1016 = vmatpush1.bf16.msra.mxu0 %v1007
      %1017 = vmatprep.subr.bf16.mxu0 0
      %1018 = vmatpush1.bf16.msra.mxu0 0
      %1019 = vmatprep.subr.bf16.mxu0 0
      %1020 = vmatpush1.bf16.msra.mxu0 0
      %1021 = vmatprep.subr.bf16.mxu0 0
      %1022 = vmatpush1.bf16.msra.mxu0 0
      %1023 = vmatprep.subr.bf16.mxu0 0
      %1024 = vmatpush1.bf16.msra.mxu0 0
      %1025 = vmatprep.subr.bf16.mxu0 0
      %1026 = vmatpush1.bf16.msra.mxu0 0
      %1027 = vmatprep.subr.bf16.mxu0 0
      %1028 = vmatpush1.bf16.msra.mxu0 0
      %1029 = vmatprep.subr.bf16.mxu0 0
      %1030 = vmatpush1.bf16.msra.mxu0 0
      %1031 = vmatprep.subr.bf16.mxu0 0
      %1032 = vmatpush1.bf16.msra.mxu0 0
      %1033 = vmatprep.subr.bf16.mxu0 0
      %1034 = vmatpush1.bf16.msra.mxu0 0
      %1035 = vmatprep.subr.bf16.mxu0 0
      %1036 = vmatpush1.bf16.msra.mxu0 0
      %1037 = vmatprep.subr.bf16.mxu0 0
      %1038 = vmatpush1.bf16.msra.mxu0 0
      %1039 = vmatprep.subr.bf16.mxu0 0
      %1040 = vmatpush1.bf16.msra.mxu0 0
      %1041 = vmatprep.subr.bf16.mxu0 0
      %1042 = vmatpush1.bf16.msra.mxu0 0
      %1043 = vmatprep.subr.bf16.mxu0 0
      %1044 = vmatpush1.bf16.msra.mxu0 0
      %1045 = vmatprep.subr.bf16.mxu0 0
      %1046 = vmatpush1.bf16.msra.mxu0 0
      %1047 = vmatprep.mubr.bf16.mxu0 0
      %1048 = vmatmul.mubr.bf16.gmra.mrb[0].mxu0 %v1013
      %v1049 = vpop.f32.mrb[0].mxu0
      %v1050 = vadd.f32 0.0, %v1049
      %v1051 = vpop.f32.mrb[0].mxu0
      %v1052 = vadd.f32 0.0, %v1051
      %v1053 = vpop.f32.mrb[0].mxu0
      %v1054 = vpop.f32.mrb[0].mxu0
      %1055 = vdwg.mxu0
      %1056 = vmatprep.subr.bf16.mxu0 0
      %1057 = vmatpush1.bf16.msra.mxu0 %v1006
      %1058 = vmatprep.subr.bf16.mxu0 0
      %1059 = vmatpush1.bf16.msra.mxu0 0
      %1060 = vmatprep.subr.bf16.mxu0 0
      %1061 = vmatpush1.bf16.msra.mxu0 0
      %1062 = vmatprep.subr.bf16.mxu0 0
      %1063 = vmatpush1.bf16.msra.mxu0 0
      %1064 = vmatprep.subr.bf16.mxu0 0
      %1065 = vmatpush1.bf16.msra.mxu0 0
      %1066 = vmatprep.subr.bf16.mxu0 0
      %1067 = vmatpush1.bf16.msra.mxu0 0
      %1068 = vmatprep.subr.bf16.mxu0 0
      %1069 = vmatpush1.bf16.msra.mxu0 0
      %1070 = vmatprep.subr.bf16.mxu0 0
      %1071 = vmatpush1.bf16.msra.mxu0 0
      %1072 = vmatprep.subr.bf16.mxu0 0
      %1073 = vmatpush1.bf16.msra.mxu0 0
      %1074 = vmatprep.subr.bf16.mxu0 0
      %1075 = vmatpush1.bf16.msra.mxu0 0
      %1076 = vmatprep.subr.bf16.mxu0 0
      %1077 = vmatpush1.bf16.msra.mxu0 0
      %1078 = vmatprep.subr.bf16.mxu0 0
      %1079 = vmatpush1.bf16.msra.mxu0 0
      %1080 = vmatprep.subr.bf16.mxu0 0
      %1081 = vmatpush1.bf16.msra.mxu0 0
      %1082 = vmatprep.subr.bf16.mxu0 0
      %1083 = vmatpush1.bf16.msra.mxu0 0
      %1084 = vmatprep.subr.bf16.mxu0 0
      %1085 = vmatpush1.bf16.msra.mxu0 0
      %1086 = vmatprep.subr.bf16.mxu0 0
      %1087 = vmatpush1.bf16.msra.mxu0 0
      %1088 = vmatprep.mubr.bf16.mxu0 0
      %1089 = vmatmul.mubr.bf16.gmra.mrb[0].mxu0 %v1013
      %v1090 = vpop.f32.mrb[0].mxu0
      %v1091 = vadd.f32 0.0, %v1090
      %v1092 = vpop.f32.mrb[0].mxu0
      %v1093 = vpop.f32.mrb[0].mxu0
      %v1094 = vpop.f32.mrb[0].mxu0
      %1095 = vdwg.mxu0
      %v1096 = vadd.f32 %v996, %v1050
      %v1097 = vadd.f32 %v997, %v1052
      %v1098 = vadd.f32 %v998, %v1091
      %s1099 = scalar_lea.vmem %s2, 16
      %v1100 = vld [vmem:[%s1099] sm:$0xf]
      %1101 = vrot.lane.b32.xlu0 %v705, 107
      %v1102 = vpop.permute.xlu0 %1101
      %1103 = vrot.lane.b32.xlu0 %v706, 107
      %v1104 = vpop.permute.xlu0 %1103
      %1105 = vrot.lane.b32.xlu0 %v707, 107
      %v1106 = vpop.permute.xlu0 %1105
      %v1107 = vsel %vm384, %v1102, %v1104
      %v1108 = vsel %vm384, %v1104, %v1106
      %v1113 = vsel %vm708, %v1100, 0
      %1115 = vmatprep.subr.bf16.mxu0 %v1108
      %1116 = vmatpush1.bf16.msra.mxu0 %v1107
      %1117 = vmatprep.subr.bf16.mxu0 0
      %1118 = vmatpush1.bf16.msra.mxu0 0
      %1119 = vmatprep.subr.bf16.mxu0 0
      %1120 = vmatpush1.bf16.msra.mxu0 0
      %1121 = vmatprep.subr.bf16.mxu0 0
      %1122 = vmatpush1.bf16.msra.mxu0 0
      %1123 = vmatprep.subr.bf16.mxu0 0
      %1124 = vmatpush1.bf16.msra.mxu0 0
      %1125 = vmatprep.subr.bf16.mxu0 0
      %1126 = vmatpush1.bf16.msra.mxu0 0
      %1127 = vmatprep.subr.bf16.mxu0 0
      %1128 = vmatpush1.bf16.msra.mxu0 0
      %1129 = vmatprep.subr.bf16.mxu0 0
      %1130 = vmatpush1.bf16.msra.mxu0 0
      %1131 = vmatprep.subr.bf16.mxu0 0
      %1132 = vmatpush1.bf16.msra.mxu0 0
      %1133 = vmatprep.subr.bf16.mxu0 0
      %1134 = vmatpush1.bf16.msra.mxu0 0
      %1135 = vmatprep.subr.bf16.mxu0 0
      %1136 = vmatpush1.bf16.msra.mxu0 0
      %1137 = vmatprep.subr.bf16.mxu0 0
      %1138 = vmatpush1.bf16.msra.mxu0 0
      %1139 = vmatprep.subr.bf16.mxu0 0
      %1140 = vmatpush1.bf16.msra.mxu0 0
      %1141 = vmatprep.subr.bf16.mxu0 0
      %1142 = vmatpush1.bf16.msra.mxu0 0
      %1143 = vmatprep.subr.bf16.mxu0 0
      %1144 = vmatpush1.bf16.msra.mxu0 0
      %1145 = vmatprep.subr.bf16.mxu0 0
      %1146 = vmatpush1.bf16.msra.mxu0 0
      %1147 = vmatprep.mubr.bf16.mxu0 0
      %1148 = vmatmul.mubr.bf16.gmra.mrb[0].mxu0 %v1113
      %v1149 = vpop.f32.mrb[0].mxu0
      %v1150 = vadd.f32 0.0, %v1149
      %v1151 = vpop.f32.mrb[0].mxu0
      %v1152 = vadd.f32 0.0, %v1151
      %v1153 = vpop.f32.mrb[0].mxu0
      %v1154 = vpop.f32.mrb[0].mxu0
      %1155 = vdwg.mxu0
      %1156 = vmatprep.subr.bf16.mxu0 0
      %1157 = vmatpush1.bf16.msra.mxu0 %v1106
      %1158 = vmatprep.subr.bf16.mxu0 0
      %1159 = vmatpush1.bf16.msra.mxu0 0
      %1160 = vmatprep.subr.bf16.mxu0 0
      %1161 = vmatpush1.bf16.msra.mxu0 0
      %1162 = vmatprep.subr.bf16.mxu0 0
      %1163 = vmatpush1.bf16.msra.mxu0 0
      %1164 = vmatprep.subr.bf16.mxu0 0
      %1165 = vmatpush1.bf16.msra.mxu0 0
      %1166 = vmatprep.subr.bf16.mxu0 0
      %1167 = vmatpush1.bf16.msra.mxu0 0
      %1168 = vmatprep.subr.bf16.mxu0 0
      %1169 = vmatpush1.bf16.msra.mxu0 0
      %1170 = vmatprep.subr.bf16.mxu0 0
      %1171 = vmatpush1.bf16.msra.mxu0 0
      %1172 = vmatprep.subr.bf16.mxu0 0
      %1173 = vmatpush1.bf16.msra.mxu0 0
      %1174 = vmatprep.subr.bf16.mxu0 0
      %1175 = vmatpush1.bf16.msra.mxu0 0
      %1176 = vmatprep.subr.bf16.mxu0 0
      %1177 = vmatpush1.bf16.msra.mxu0 0
      %1178 = vmatprep.subr.bf16.mxu0 0
      %1179 = vmatpush1.bf16.msra.mxu0 0
      %1180 = vmatprep.subr.bf16.mxu0 0
      %1181 = vmatpush1.bf16.msra.mxu0 0
      %1182 = vmatprep.subr.bf16.mxu0 0
      %1183 = vmatpush1.bf16.msra.mxu0 0
      %1184 = vmatprep.subr.bf16.mxu0 0
      %1185 = vmatpush1.bf16.msra.mxu0 0
      %1186 = vmatprep.subr.bf16.mxu0 0
      %1187 = vmatpush1.bf16.msra.mxu0 0
      %1188 = vmatprep.mubr.bf16.mxu0 0
      %1189 = vmatmul.mubr.bf16.gmra.mrb[0].mxu0 %v1113
      %v1190 = vpop.f32.mrb[0].mxu0
      %v1191 = vadd.f32 0.0, %v1190
      %v1192 = vpop.f32.mrb[0].mxu0
      %v1193 = vpop.f32.mrb[0].mxu0
      %v1194 = vpop.f32.mrb[0].mxu0
      %1195 = vdwg.mxu0
      %v1196 = vadd.f32 %v1096, %v1150
      %v1197 = vadd.f32 %v1097, %v1152
      %v1198 = vadd.f32 %v1098, %v1191
      %s1199 = scalar_lea.vmem %s2, 20
      %v1200 = vld [vmem:[%s1199] sm:$0xf]
      %1201 = vrot.lane.b32.xlu0 %v705, 106
      %v1202 = vpop.permute.xlu0 %1201
      %1203 = vrot.lane.b32.xlu0 %v706, 106
      %v1204 = vpop.permute.xlu0 %1203
      %1205 = vrot.lane.b32.xlu0 %v707, 106
      %v1206 = vpop.permute.xlu0 %1205
      %v1207 = vsel %vm414, %v1202, %v1204
      %v1208 = vsel %vm414, %v1204, %v1206
      %v1213 = vsel %vm708, %v1200, 0
      %1215 = vmatprep.subr.bf16.mxu0 %v1208
      %1216 = vmatpush1.bf16.msra.mxu0 %v1207
      %1217 = vmatprep.subr.bf16.mxu0 0
      %1218 = vmatpush1.bf16.msra.mxu0 0
      %1219 = vmatprep.subr.bf16.mxu0 0
      %1220 = vmatpush1.bf16.msra.mxu0 0
      %1221 = vmatprep.subr.bf16.mxu0 0
      %1222 = vmatpush1.bf16.msra.mxu0 0
      %1223 = vmatprep.subr.bf16.mxu0 0
      %1224 = vmatpush1.bf16.msra.mxu0 0
      %1225 = vmatprep.subr.bf16.mxu0 0
      %1226 = vmatpush1.bf16.msra.mxu0 0
      %1227 = vmatprep.subr.bf16.mxu0 0
      %1228 = vmatpush1.bf16.msra.mxu0 0
      %1229 = vmatprep.subr.bf16.mxu0 0
      %1230 = vmatpush1.bf16.msra.mxu0 0
      %1231 = vmatprep.subr.bf16.mxu0 0
      %1232 = vmatpush1.bf16.msra.mxu0 0
      %1233 = vmatprep.subr.bf16.mxu0 0
      %1234 = vmatpush1.bf16.msra.mxu0 0
      %1235 = vmatprep.subr.bf16.mxu0 0
      %1236 = vmatpush1.bf16.msra.mxu0 0
      %1237 = vmatprep.subr.bf16.mxu0 0
      %1238 = vmatpush1.bf16.msra.mxu0 0
      %1239 = vmatprep.subr.bf16.mxu0 0
      %1240 = vmatpush1.bf16.msra.mxu0 0
      %1241 = vmatprep.subr.bf16.mxu0 0
      %1242 = vmatpush1.bf16.msra.mxu0 0
      %1243 = vmatprep.subr.bf16.mxu0 0
      %1244 = vmatpush1.bf16.msra.mxu0 0
      %1245 = vmatprep.subr.bf16.mxu0 0
      %1246 = vmatpush1.bf16.msra.mxu0 0
      %1247 = vmatprep.mubr.bf16.mxu0 0
      %1248 = vmatmul.mubr.bf16.gmra.mrb[0].mxu0 %v1213
      %v1249 = vpop.f32.mrb[0].mxu0
      %v1250 = vadd.f32 0.0, %v1249
      %v1251 = vpop.f32.mrb[0].mxu0
      %v1252 = vadd.f32 0.0, %v1251
      %v1253 = vpop.f32.mrb[0].mxu0
      %v1254 = vpop.f32.mrb[0].mxu0
      %1255 = vdwg.mxu0
      %1256 = vmatprep.subr.bf16.mxu0 0
      %1257 = vmatpush1.bf16.msra.mxu0 %v1206
      %1258 = vmatprep.subr.bf16.mxu0 0
      %1259 = vmatpush1.bf16.msra.mxu0 0
      %1260 = vmatprep.subr.bf16.mxu0 0
      %1261 = vmatpush1.bf16.msra.mxu0 0
      %1262 = vmatprep.subr.bf16.mxu0 0
      %1263 = vmatpush1.bf16.msra.mxu0 0
      %1264 = vmatprep.subr.bf16.mxu0 0
      %1265 = vmatpush1.bf16.msra.mxu0 0
      %1266 = vmatprep.subr.bf16.mxu0 0
      %1267 = vmatpush1.bf16.msra.mxu0 0
      %1268 = vmatprep.subr.bf16.mxu0 0
      %1269 = vmatpush1.bf16.msra.mxu0 0
      %1270 = vmatprep.subr.bf16.mxu0 0
      %1271 = vmatpush1.bf16.msra.mxu0 0
      %1272 = vmatprep.subr.bf16.mxu0 0
      %1273 = vmatpush1.bf16.msra.mxu0 0
      %1274 = vmatprep.subr.bf16.mxu0 0
      %1275 = vmatpush1.bf16.msra.mxu0 0
      %1276 = vmatprep.subr.bf16.mxu0 0
      %1277 = vmatpush1.bf16.msra.mxu0 0
      %1278 = vmatprep.subr.bf16.mxu0 0
      %1279 = vmatpush1.bf16.msra.mxu0 0
      %1280 = vmatprep.subr.bf16.mxu0 0
      %1281 = vmatpush1.bf16.msra.mxu0 0
      %1282 = vmatprep.subr.bf16.mxu0 0
      %1283 = vmatpush1.bf16.msra.mxu0 0
      %1284 = vmatprep.subr.bf16.mxu0 0
      %1285 = vmatpush1.bf16.msra.mxu0 0
      %1286 = vmatprep.subr.bf16.mxu0 0
      %1287 = vmatpush1.bf16.msra.mxu0 0
      %1288 = vmatprep.mubr.bf16.mxu0 0
      %1289 = vmatmul.mubr.bf16.gmra.mrb[0].mxu0 %v1213
      %v1290 = vpop.f32.mrb[0].mxu0
      %v1291 = vadd.f32 0.0, %v1290
      %v1292 = vpop.f32.mrb[0].mxu0
      %v1293 = vpop.f32.mrb[0].mxu0
      %v1294 = vpop.f32.mrb[0].mxu0
      %1295 = vdwg.mxu0
      %v1296 = vadd.f32 %v1196, %v1250
      %v1297 = vadd.f32 %v1197, %v1252
      %v1298 = vadd.f32 %v1198, %v1291
      %s1299 = scalar_lea.vmem %s2, 24
      %v1300 = vld [vmem:[%s1299] sm:$0xf]
      %1301 = vrot.lane.b32.xlu0 %v705, 88
      %v1302 = vpop.permute.xlu0 %1301
      %1303 = vrot.lane.b32.xlu0 %v706, 88
      %v1304 = vpop.permute.xlu0 %1303
      %1305 = vrot.lane.b32.xlu0 %v707, 88
      %v1306 = vpop.permute.xlu0 %1305
      %v1307 = vsel %vm444, %v1302, %v1304
      %v1308 = vsel %vm444, %v1304, %v1306
      %v1313 = vsel %vm708, %v1300, 0
      %1315 = vmatprep.subr.bf16.mxu0 %v1308
      %1316 = vmatpush1.bf16.msra.mxu0 %v1307
      %1317 = vmatprep.subr.bf16.mxu0 0
      %1318 = vmatpush1.bf16.msra.mxu0 0
      %1319 = vmatprep.subr.bf16.mxu0 0
      %1320 = vmatpush1.bf16.msra.mxu0 0
      %1321 = vmatprep.subr.bf16.mxu0 0
      %1322 = vmatpush1.bf16.msra.mxu0 0
      %1323 = vmatprep.subr.bf16.mxu0 0
      %1324 = vmatpush1.bf16.msra.mxu0 0
      %1325 = vmatprep.subr.bf16.mxu0 0
      %1326 = vmatpush1.bf16.msra.mxu0 0
      %1327 = vmatprep.subr.bf16.mxu0 0
      %1328 = vmatpush1.bf16.msra.mxu0 0
      %1329 = vmatprep.subr.bf16.mxu0 0
      %1330 = vmatpush1.bf16.msra.mxu0 0
      %1331 = vmatprep.subr.bf16.mxu0 0
      %1332 = vmatpush1.bf16.msra.mxu0 0
      %1333 = vmatprep.subr.bf16.mxu0 0
      %1334 = vmatpush1.bf16.msra.mxu0 0
      %1335 = vmatprep.subr.bf16.mxu0 0
      %1336 = vmatpush1.bf16.msra.mxu0 0
      %1337 = vmatprep.subr.bf16.mxu0 0
      %1338 = vmatpush1.bf16.msra.mxu0 0
      %1339 = vmatprep.subr.bf16.mxu0 0
      %1340 = vmatpush1.bf16.msra.mxu0 0
      %1341 = vmatprep.subr.bf16.mxu0 0
      %1342 = vmatpush1.bf16.msra.mxu0 0
      %1343 = vmatprep.subr.bf16.mxu0 0
      %1344 = vmatpush1.bf16.msra.mxu0 0
      %1345 = vmatprep.subr.bf16.mxu0 0
      %1346 = vmatpush1.bf16.msra.mxu0 0
      %1347 = vmatprep.mubr.bf16.mxu0 0
      %1348 = vmatmul.mubr.bf16.gmra.mrb[0].mxu0 %v1313
      %v1349 = vpop.f32.mrb[0].mxu0
      %v1350 = vadd.f32 0.0, %v1349
      %v1351 = vpop.f32.mrb[0].mxu0
      %v1352 = vadd.f32 0.0, %v1351
      %v1353 = vpop.f32.mrb[0].mxu0
      %v1354 = vpop.f32.mrb[0].mxu0
      %1355 = vdwg.mxu0
      %1356 = vmatprep.subr.bf16.mxu0 0
      %1357 = vmatpush1.bf16.msra.mxu0 %v1306
      %1358 = vmatprep.subr.bf16.mxu0 0
      %1359 = vmatpush1.bf16.msra.mxu0 0
      %1360 = vmatprep.subr.bf16.mxu0 0
      %1361 = vmatpush1.bf16.msra.mxu0 0
      %1362 = vmatprep.subr.bf16.mxu0 0
      %1363 = vmatpush1.bf16.msra.mxu0 0
      %1364 = vmatprep.subr.bf16.mxu0 0
      %1365 = vmatpush1.bf16.msra.mxu0 0
      %1366 = vmatprep.subr.bf16.mxu0 0
      %1367 = vmatpush1.bf16.msra.mxu0 0
      %1368 = vmatprep.subr.bf16.mxu0 0
      %1369 = vmatpush1.bf16.msra.mxu0 0
      %1370 = vmatprep.subr.bf16.mxu0 0
      %1371 = vmatpush1.bf16.msra.mxu0 0
      %1372 = vmatprep.subr.bf16.mxu0 0
      %1373 = vmatpush1.bf16.msra.mxu0 0
      %1374 = vmatprep.subr.bf16.mxu0 0
      %1375 = vmatpush1.bf16.msra.mxu0 0
      %1376 = vmatprep.subr.bf16.mxu0 0
      %1377 = vmatpush1.bf16.msra.mxu0 0
      %1378 = vmatprep.subr.bf16.mxu0 0
      %1379 = vmatpush1.bf16.msra.mxu0 0
      %1380 = vmatprep.subr.bf16.mxu0 0
      %1381 = vmatpush1.bf16.msra.mxu0 0
      %1382 = vmatprep.subr.bf16.mxu0 0
      %1383 = vmatpush1.bf16.msra.mxu0 0
      %1384 = vmatprep.subr.bf16.mxu0 0
      %1385 = vmatpush1.bf16.msra.mxu0 0
      %1386 = vmatprep.subr.bf16.mxu0 0
      %1387 = vmatpush1.bf16.msra.mxu0 0
      %1388 = vmatprep.mubr.bf16.mxu0 0
      %1389 = vmatmul.mubr.bf16.gmra.mrb[0].mxu0 %v1313
      %v1390 = vpop.f32.mrb[0].mxu0
      %v1391 = vadd.f32 0.0, %v1390
      %v1392 = vpop.f32.mrb[0].mxu0
      %v1393 = vpop.f32.mrb[0].mxu0
      %v1394 = vpop.f32.mrb[0].mxu0
      %1395 = vdwg.mxu0
      %v1396 = vadd.f32 %v1296, %v1350
      %v1397 = vadd.f32 %v1297, %v1352
      %v1398 = vadd.f32 %v1298, %v1391
      %s1399 = scalar_lea.vmem %s2, 28
      %v1400 = vld [vmem:[%s1399] sm:$0xf]
      %1401 = vrot.lane.b32.xlu0 %v705, 87
      %v1402 = vpop.permute.xlu0 %1401
      %1403 = vrot.lane.b32.xlu0 %v706, 87
      %v1404 = vpop.permute.xlu0 %1403
      %1405 = vrot.lane.b32.xlu0 %v707, 87
      %v1406 = vpop.permute.xlu0 %1405
      %v1407 = vsel %vm475, %v1402, %v1404
      %v1408 = vsel %vm475, %v1404, %v1406
      %v1413 = vsel %vm708, %v1400, 0
      %1415 = vmatprep.subr.bf16.mxu0 %v1408
      %1416 = vmatpush1.bf16.msra.mxu0 %v1407
      %1417 = vmatprep.subr.bf16.mxu0 0
      %1418 = vmatpush1.bf16.msra.mxu0 0
      %1419 = vmatprep.subr.bf16.mxu0 0
      %1420 = vmatpush1.bf16.msra.mxu0 0
      %1421 = vmatprep.subr.bf16.mxu0 0
      %1422 = vmatpush1.bf16.msra.mxu0 0
      %1423 = vmatprep.subr.bf16.mxu0 0
      %1424 = vmatpush1.bf16.msra.mxu0 0
      %1425 = vmatprep.subr.bf16.mxu0 0
      %1426 = vmatpush1.bf16.msra.mxu0 0
      %1427 = vmatprep.subr.bf16.mxu0 0
      %1428 = vmatpush1.bf16.msra.mxu0 0
      %1429 = vmatprep.subr.bf16.mxu0 0
      %1430 = vmatpush1.bf16.msra.mxu0 0
      %1431 = vmatprep.subr.bf16.mxu0 0
      %1432 = vmatpush1.bf16.msra.mxu0 0
      %1433 = vmatprep.subr.bf16.mxu0 0
      %1434 = vmatpush1.bf16.msra.mxu0 0
      %1435 = vmatprep.subr.bf16.mxu0 0
      %1436 = vmatpush1.bf16.msra.mxu0 0
      %1437 = vmatprep.subr.bf16.mxu0 0
      %1438 = vmatpush1.bf16.msra.mxu0 0
      %1439 = vmatprep.subr.bf16.mxu0 0
      %1440 = vmatpush1.bf16.msra.mxu0 0
      %1441 = vmatprep.subr.bf16.mxu0 0
      %1442 = vmatpush1.bf16.msra.mxu0 0
      %1443 = vmatprep.subr.bf16.mxu0 0
      %1444 = vmatpush1.bf16.msra.mxu0 0
      %1445 = vmatprep.subr.bf16.mxu0 0
      %1446 = vmatpush1.bf16.msra.mxu0 0
      %1447 = vmatprep.mubr.bf16.mxu0 0
      %1448 = vmatmul.mubr.bf16.gmra.mrb[0].mxu0 %v1413
      %v1449 = vpop.f32.mrb[0].mxu0
      %v1450 = vadd.f32 0.0, %v1449
      %v1451 = vpop.f32.mrb[0].mxu0
      %v1452 = vadd.f32 0.0, %v1451
      %v1453 = vpop.f32.mrb[0].mxu0
      %v1454 = vpop.f32.mrb[0].mxu0
      %1455 = vdwg.mxu0
      %1456 = vmatprep.subr.bf16.mxu0 0
      %1457 = vmatpush1.bf16.msra.mxu0 %v1406
      %1458 = vmatprep.subr.bf16.mxu0 0
      %1459 = vmatpush1.bf16.msra.mxu0 0
      %1460 = vmatprep.subr.bf16.mxu0 0
      %1461 = vmatpush1.bf16.msra.mxu0 0
      %1462 = vmatprep.subr.bf16.mxu0 0
      %1463 = vmatpush1.bf16.msra.mxu0 0
      %1464 = vmatprep.subr.bf16.mxu0 0
      %1465 = vmatpush1.bf16.msra.mxu0 0
      %1466 = vmatprep.subr.bf16.mxu0 0
      %1467 = vmatpush1.bf16.msra.mxu0 0
      %1468 = vmatprep.subr.bf16.mxu0 0
      %1469 = vmatpush1.bf16.msra.mxu0 0
      %1470 = vmatprep.subr.bf16.mxu0 0
      %1471 = vmatpush1.bf16.msra.mxu0 0
      %1472 = vmatprep.subr.bf16.mxu0 0
      %1473 = vmatpush1.bf16.msra.mxu0 0
      %1474 = vmatprep.subr.bf16.mxu0 0
      %1475 = vmatpush1.bf16.msra.mxu0 0
      %1476 = vmatprep.subr.bf16.mxu0 0
      %1477 = vmatpush1.bf16.msra.mxu0 0
      %1478 = vmatprep.subr.bf16.mxu0 0
      %1479 = vmatpush1.bf16.msra.mxu0 0
      %1480 = vmatprep.subr.bf16.mxu0 0
      %1481 = vmatpush1.bf16.msra.mxu0 0
      %1482 = vmatprep.subr.bf16.mxu0 0
      %1483 = vmatpush1.bf16.msra.mxu0 0
      %1484 = vmatprep.subr.bf16.mxu0 0
      %1485 = vmatpush1.bf16.msra.mxu0 0
      %1486 = vmatprep.subr.bf16.mxu0 0
      %1487 = vmatpush1.bf16.msra.mxu0 0
      %1488 = vmatprep.mubr.bf16.mxu0 0
      %1489 = vmatmul.mubr.bf16.gmra.mrb[0].mxu0 %v1413
      %v1490 = vpop.f32.mrb[0].mxu0
      %v1491 = vadd.f32 0.0, %v1490
      %v1492 = vpop.f32.mrb[0].mxu0
      %v1493 = vpop.f32.mrb[0].mxu0
      %v1494 = vpop.f32.mrb[0].mxu0
      %1495 = vdwg.mxu0
      %v1496 = vadd.f32 %v1396, %v1450
      %v1497 = vadd.f32 %v1397, %v1452
      %v1498 = vadd.f32 %v1398, %v1491
      %s1499 = scalar_lea.vmem %s2, 32
      %v1500 = vld [vmem:[%s1499] sm:$0xf]
      %1501 = vrot.lane.b32.xlu0 %v705, 86
      %v1502 = vpop.permute.xlu0 %1501
      %1503 = vrot.lane.b32.xlu0 %v706, 86
      %v1504 = vpop.permute.xlu0 %1503
      %1505 = vrot.lane.b32.xlu0 %v707, 86
      %v1506 = vpop.permute.xlu0 %1505
      %v1507 = vsel %vm506, %v1502, %v1504
      %v1508 = vsel %vm506, %v1504, %v1506
      %v1513 = vsel %vm708, %v1500, 0
      %1515 = vmatprep.subr.bf16.mxu0 %v1508
      %1516 = vmatpush1.bf16.msra.mxu0 %v1507
      %1517 = vmatprep.subr.bf16.mxu0 0
      %1518 = vmatpush1.bf16.msra.mxu0 0
      %1519 = vmatprep.subr.bf16.mxu0 0
      %1520 = vmatpush1.bf16.msra.mxu0 0
      %1521 = vmatprep.subr.bf16.mxu0 0
      %1522 = vmatpush1.bf16.msra.mxu0 0
      %1523 = vmatprep.subr.bf16.mxu0 0
      %1524 = vmatpush1.bf16.msra.mxu0 0
      %1525 = vmatprep.subr.bf16.mxu0 0
      %1526 = vmatpush1.bf16.msra.mxu0 0
      %1527 = vmatprep.subr.bf16.mxu0 0
      %1528 = vmatpush1.bf16.msra.mxu0 0
      %1529 = vmatprep.subr.bf16.mxu0 0
      %1530 = vmatpush1.bf16.msra.mxu0 0
      %1531 = vmatprep.subr.bf16.mxu0 0
      %1532 = vmatpush1.bf16.msra.mxu0 0
      %1533 = vmatprep.subr.bf16.mxu0 0
      %1534 = vmatpush1.bf16.msra.mxu0 0
      %1535 = vmatprep.subr.bf16.mxu0 0
      %1536 = vmatpush1.bf16.msra.mxu0 0
      %1537 = vmatprep.subr.bf16.mxu0 0
      %1538 = vmatpush1.bf16.msra.mxu0 0
      %1539 = vmatprep.subr.bf16.mxu0 0
      %1540 = vmatpush1.bf16.msra.mxu0 0
      %1541 = vmatprep.subr.bf16.mxu0 0
      %1542 = vmatpush1.bf16.msra.mxu0 0
      %1543 = vmatprep.subr.bf16.mxu0 0
      %1544 = vmatpush1.bf16.msra.mxu0 0
      %1545 = vmatprep.subr.bf16.mxu0 0
      %1546 = vmatpush1.bf16.msra.mxu0 0
      %1547 = vmatprep.mubr.bf16.mxu0 0
      %1548 = vmatmul.mubr.bf16.gmra.mrb[0].mxu0 %v1513
      %v1549 = vpop.f32.mrb[0].mxu0
      %v1550 = vadd.f32 0.0, %v1549
      %v1551 = vpop.f32.mrb[0].mxu0
      %v1552 = vadd.f32 0.0, %v1551
      %v1553 = vpop.f32.mrb[0].mxu0
      %v1554 = vpop.f32.mrb[0].mxu0
      %1555 = vdwg.mxu0
      %1556 = vmatprep.subr.bf16.mxu0 0
      %1557 = vmatpush1.bf16.msra.mxu0 %v1506
      %1558 = vmatprep.subr.bf16.mxu0 0
      %1559 = vmatpush1.bf16.msra.mxu0 0
      %1560 = vmatprep.subr.bf16.mxu0 0
      %1561 = vmatpush1.bf16.msra.mxu0 0
      %1562 = vmatprep.subr.bf16.mxu0 0
      %1563 = vmatpush1.bf16.msra.mxu0 0
      %1564 = vmatprep.subr.bf16.mxu0 0
      %1565 = vmatpush1.bf16.msra.mxu0 0
      %1566 = vmatprep.subr.bf16.mxu0 0
      %1567 = vmatpush1.bf16.msra.mxu0 0
      %1568 = vmatprep.subr.bf16.mxu0 0
      %1569 = vmatpush1.bf16.msra.mxu0 0
      %1570 = vmatprep.subr.bf16.mxu0 0
      %1571 = vmatpush1.bf16.msra.mxu0 0
      %1572 = vmatprep.subr.bf16.mxu0 0
      %1573 = vmatpush1.bf16.msra.mxu0 0
      %1574 = vmatprep.subr.bf16.mxu0 0
      %1575 = vmatpush1.bf16.msra.mxu0 0
      %1576 = vmatprep.subr.bf16.mxu0 0
      %1577 = vmatpush1.bf16.msra.mxu0 0
      %1578 = vmatprep.subr.bf16.mxu0 0
      %1579 = vmatpush1.bf16.msra.mxu0 0
      %1580 = vmatprep.subr.bf16.mxu0 0
      %1581 = vmatpush1.bf16.msra.mxu0 0
      %1582 = vmatprep.subr.bf16.mxu0 0
      %1583 = vmatpush1.bf16.msra.mxu0 0
      %1584 = vmatprep.subr.bf16.mxu0 0
      %1585 = vmatpush1.bf16.msra.mxu0 0
      %1586 = vmatprep.subr.bf16.mxu0 0
      %1587 = vmatpush1.bf16.msra.mxu0 0
      %1588 = vmatprep.mubr.bf16.mxu0 0
      %1589 = vmatmul.mubr.bf16.gmra.mrb[0].mxu0 %v1513
      %v1590 = vpop.f32.mrb[0].mxu0
      %v1591 = vadd.f32 0.0, %v1590
      %v1592 = vpop.f32.mrb[0].mxu0
      %v1593 = vpop.f32.mrb[0].mxu0
      %v1594 = vpop.f32.mrb[0].mxu0
      %1595 = vdwg.mxu0
      %v1596 = vadd.f32 %v1496, %v1550
      %v1597 = vadd.f32 %v1497, %v1552
      %v1598 = vadd.f32 %v1498, %v1591
      %1599 = vst [vmem:[%s244] sm:$0xff] %v1596
      %1600 = vst [vmem:[%s244 + $0x8] sm:$0xff] %v1597
      %vm1601 = vcmask 523264
      %1602 = vst.msk [vmem:[%s244 + $0x10] sm:$0xff] %vm1601, %v1598
      %p1603 = scmp.lt.s32.totalorder %s16, 1
      %s1604 = scalar_select %p1603, %s16, 1
      %s1605 = smul.addr %s1604, 3
      %s1606 = smul.addr %s1605, 8
      %s1607 = scalar_lea.vmem %s5, %s1606
      // Predicated region
      $region41: #{dense_corr2d_full.1} parent=39 // pred_check
        %p1608 = pneg %p149
      $region42: #{dense_corr2d_full.1} parent=39 // pred_check_branch
        %1610 = sbr.rel (%p1608) target = $region44
      $region43: #{dense_corr2d_full.1} parent=39 // pred_region
        _
      $region44: #{dense_corr2d_full.1} parent=39 // pred_fallthru
        _
    $region40: #{dense_corr2d_full.1} parent=5 // pred_fallthru
      _
    %p1611 = scmp.le.s32.totalorder 2, %s11
    // Predicated region
    $region45: #{dense_corr2d_full.1} parent=5 // pred_check
      %p1612 = pneg %p1611
    $region46: #{dense_corr2d_full.1} parent=5 // pred_check_branch
      %1614 = sbr.rel (%p1612) target = $region48
    $region47: #{dense_corr2d_full.1} parent=5 // pred_region
      %s1615 = ssub.s32 %s11, 2
      // Predicated region
      $region49: #{dense_corr2d_full.1} parent=47 // pred_check
        %p1616 = pneg %p155
      $region50: #{dense_corr2d_full.1} parent=47 // pred_check_branch
        %1618 = sbr.rel (%p1616) target = $region52
      $region51: #{dense_corr2d_full.1} parent=47 // pred_region
        %p1619 = scmp.lt.s32.totalorder %s17, 1
        %s1620 = scalar_select %p1619, %s17, 1
        %s1621 = smul.addr %s1620, 3
        %s1622 = smul.addr %s1621, 8
        %s1623 = scalar_lea.vmem %s5, %s1622
      $region52: #{dense_corr2d_full.1} parent=47 // pred_fallthru
        _
    $region48: #{dense_corr2d_full.1} parent=5 // pred_fallthru
      _
  $region6: #{dense_corr2d_full.1} parent=0 // loop_footer
    %s15 = sadd.s32 1, %s11
  $region7: #{dense_corr2d_full.1} parent=0 // loop_footer_branch
    %10 = sbr.rel target = $region3
  $region8: #{dense_corr2d_full.1} parent=0 // loop_exit
    _

</llo_original>
